<compile_context>
chip_gen: v5e
topology: v5e:2x2
jax: 0.10.0
libtpu: 0.0.40
codegen_flags: <defaults>
</compile_context>

<pallas_src>
import functools

import jax
import jax.numpy as jnp
from jax import lax
from jax.experimental import pallas as pl
from jax.experimental.pallas import tpu as pltpu

EPS = 1e-5  # torch.nn.GroupNorm default


def odefunc_kernel(x_ref, mask_ref, red_ref, gb_ref, w1_ref, w2_ref,
                   o_ref, stk_ref, *, num_groups, Nb, H, W):
    C = o_ref.shape[1]
    HWp = o_ref.shape[2]
    HW = H * W
    cg = C // num_groups
    inv_n = 1.0 / (cg * HW)

    masks = mask_ref[...]      # (10, HWp): 9 boundary masks + valid-pixel row
    red = red_ref[...]         # (HWp, 8) valid-pixel columns (MXU moments)
    gb = gb_ref[...]           # (C, 6) = [g1 b1 g2 b2 g3 b3]

    # Constant conv-input rows (t-channel taps + bias row).  Written every
    # grid step (cheap) so megacore grid sharding never sees an uninitialized
    # scratch.
    stk_ref[9 * C:9 * C + 10, :] = masks

    def gnorm(xs, col, relu):
        # xs: (C, HWp); padded lanes are exactly 0 and masked out of moments.
        gamma = gb[:, col:col + 1]
        beta = gb[:, col + 1:col + 2]
        # Moments on the (otherwise mostly idle) MXU instead of XLU reductions.
        s = jnp.dot(xs, red, preferred_element_type=jnp.float32)[:, :1]
        s2 = jnp.dot(xs * xs, red, preferred_element_type=jnp.float32)[:, :1]
        if cg > 1:  # fold channels -> groups on the tiny (C, 1) vectors
            s = jnp.sum(s.reshape(num_groups, cg), axis=1, keepdims=True)
            s2 = jnp.sum(s2.reshape(num_groups, cg), axis=1, keepdims=True)
        mean = s * inv_n
        # single-pass (biased) variance, like torch; clamp guards cancellation
        var = jnp.maximum(s2 * inv_n - mean * mean, 0.0)
        rstd = lax.rsqrt(var + EPS)
        if cg > 1:  # broadcast group stats back to channels (tiny)
            mean = jnp.broadcast_to(mean, (num_groups, cg)).reshape(C, 1)
            rstd = jnp.broadcast_to(rstd, (num_groups, cg)).reshape(C, 1)
        scale = gamma * rstd
        off = beta - mean * scale
        y = xs * scale + off
        return jnp.maximum(y, 0.0) if relu else y

    def stack_taps(y):
        # Roll + mask the 9 x-channel taps into the conv-input scratch.
        for k in range(9):
            dy, dx = k // 3 - 1, k % 3 - 1
            shift = dy * W + dx
            r = y if shift == 0 else pltpu.roll(y, shift=(-shift) % HWp, axis=1)
            stk_ref[k * C:(k + 1) * C, :] = r * masks[k:k + 1, :]

    def body(n, carry):
        # stage 1: GN1 -> ReLU -> taps -> conv1 (bias & t folded into the dot)
        stack_taps(gnorm(x_ref[n], 0, relu=True))
        z = jnp.dot(w1_ref[...], stk_ref[...],
                    preferred_element_type=jnp.float32)          # (C, HWp)
        # stage 2: GN2 -> ReLU -> taps -> conv2
        stack_taps(gnorm(z, 2, relu=True))
        z = jnp.dot(w2_ref[...], stk_ref[...],
                    preferred_element_type=jnp.float32)          # (C, HWp)
        # stage 3: GN3 -> write out this sample
        o_ref[n] = gnorm(z, 4, relu=False).astype(o_ref.dtype)
        return carry

    lax.fori_loop(0, Nb, body, 0, unroll=True)


def odefunc_forward(t, x, params, *, io_budget_bytes=16 * 1024 * 1024):
    """x: (N, C, H, W) float32 (NCHW, like PyTorch). Returns (N, C, H, W)."""
    N, C, H, W = x.shape
    HW = H * W
    G = min(32, C)
    if C % G != 0:
        raise ValueError(f"GroupNorm requires C % min(32, C) == 0, got C={C}")

    t = jnp.asarray(t, jnp.float32)

    # lane-pad each sample's pixel axis up to a multiple of 128
    HWp = ((HW + 127) // 128) * 128
    x3 = x.astype(jnp.float32).reshape(N, C, HW)
    if HWp != HW:
        x3 = jnp.pad(x3, ((0, 0), (0, 0), (0, HWp - HW)))

    # Samples per grid step: budget the double-buffered in/out blocks, and cap
    # so the grid has >= 2 steps (keeps both v7x TensorCores busy) when N >= 2.
    per_sample_io = 4 * 4 * C * HWp                  # 2x in + 2x out, f32
    Nb = max(1, min(N, io_budget_bytes // per_sample_io))
    Nb = min(Nb, max(1, -(-N // 2)))
    Npad = -(-N // Nb) * Nb
    if Npad != N:
        x3 = jnp.pad(x3, ((0, Npad - N), (0, 0), (0, 0)))
    grid = (Npad // Nb,)

    # 10 constant rows: 9 boundary masks for 3x3 "same" conv (tap k =
    # (dy+1)*3 + (dx+1)) + the valid-pixel indicator (also the bias row).
    pix = jnp.arange(HWp, dtype=jnp.int32)
    hh, ww = pix // W, pix % W
    valid = pix < HW
    rows = []
    for dy in (-1, 0, 1):
        for dx in (-1, 0, 1):
            rows.append((hh + dy >= 0) & (hh + dy < H) &
                        (ww + dx >= 0) & (ww + dx < W) & valid)
    rows.append(valid)
    mask10 = jnp.stack(rows, axis=0).astype(jnp.float32)          # (10, HWp)
    red = jnp.tile(valid.astype(jnp.float32)[:, None], (1, 8))    # (HWp, 8)

    def conv_params(w, b):
        # w: (Cout, Cin+1, 3, 3) with the t channel FIRST; b: (Cout,)
        w = w.astype(jnp.float32)
        w_x = jnp.transpose(w[:, 1:], (0, 2, 3, 1)).reshape(C, 9 * C)
        w_t = w[:, 0].reshape(C, 9) * t           # constant-t channel, scaled
        bias = b.astype(jnp.float32)[:, None]
        return jnp.concatenate([w_x, w_t, bias], axis=1)          # (C, 9C+10)

    w1 = conv_params(params["w1"], params["cb1"])
    w2 = conv_params(params["w2"], params["cb2"])

    gb = jnp.stack([params["g1"], params["b1"],
                    params["g2"], params["b2"],
                    params["g3"], params["b3"]], axis=1).astype(jnp.float32)

    def fullspec(shape):
        rank = len(shape)
        return pl.BlockSpec(shape, lambda i, _r=rank: (0,) * _r)

    kernel = functools.partial(odefunc_kernel, num_groups=G, Nb=Nb, H=H, W=W)

    out = pl.pallas_call(
        kernel,
        out_shape=jax.ShapeDtypeStruct((Npad, C, HWp), jnp.float32),
        grid_spec=pltpu.PrefetchScalarGridSpec(
            num_scalar_prefetch=0,
            grid=grid,
            in_specs=[
                pl.BlockSpec((Nb, C, HWp), lambda i: (i, 0, 0)),  # x block
                fullspec((10, HWp)),                              # masks
                fullspec((HWp, 8)),                               # moment cols
                fullspec((C, 6)),                                 # gamma/beta
                fullspec((C, 9 * C + 10)),                        # conv1 W+
                fullspec((C, 9 * C + 10)),                        # conv2 W+
            ],
            out_specs=pl.BlockSpec((Nb, C, HWp), lambda i: (i, 0, 0)),
            scratch_shapes=[pltpu.VMEM((9 * C + 10, HWp), jnp.float32)],
        ),
        compiler_params=pltpu.CompilerParams(
            dimension_semantics=("parallel",),
            vmem_limit_bytes=48 * 1024 * 1024),
    )(x3, mask10, red, gb, w1, w2)

    return out[:N, :, :HW].reshape(N, C, H, W)


def ref_forward(t, x, params):
    """Pure-JAX reference mirroring the PyTorch module."""
    C = x.shape[1]
    G = min(32, C)

    def gn(y, gamma, beta):
        n, c, h, w = y.shape
        yg = y.reshape(n, G, (c // G) * h * w)
        mean = yg.mean(-1, keepdims=True)
        var = ((yg - mean) ** 2).mean(-1, keepdims=True)
        yn = ((yg - mean) * lax.rsqrt(var + EPS)).reshape(n, c, h, w)
        return yn * gamma[None, :, None, None] + beta[None, :, None, None]

    def cconv(y, w, b):
        tt = jnp.full_like(y[:, :1], t)
        yc = jnp.concatenate([tt, y], axis=1)
        z = lax.conv_general_dilated(
            yc, w, window_strides=(1, 1), padding=((1, 1), (1, 1)),
            dimension_numbers=("NCHW", "OIHW", "NCHW"))
        return z + b[None, :, None, None]

    out = jax.nn.relu(gn(x, params["g1"], params["b1"]))
    out = cconv(out, params["w1"], params["cb1"])
    out = jax.nn.relu(gn(out, params["g2"], params["b2"]))
    out = cconv(out, params["w2"], params["cb2"])
    return gn(out, params["g3"], params["b3"])


if __name__ == "__main__":
    N, C, H, W = 2, 4, 16, 16
    key = jax.random.PRNGKey(0)
    ks = jax.random.split(key, 12)

    x = jax.random.normal(ks[0], (N, C, H, W), jnp.float32)
    t = jnp.float32(0.5)

    params = {
        "g1": 1.0 + 0.1 * jax.random.normal(ks[1], (C,), jnp.float32),
        "b1": 0.1 * jax.random.normal(ks[2], (C,), jnp.float32),
        "w1": 0.2 * jax.random.normal(ks[3], (C, C + 1, 3, 3), jnp.float32),
        "cb1": 0.1 * jax.random.normal(ks[4], (C,), jnp.float32),
        "g2": 1.0 + 0.1 * jax.random.normal(ks[5], (C,), jnp.float32),
        "b2": 0.1 * jax.random.normal(ks[6], (C,), jnp.float32),
        "w2": 0.2 * jax.random.normal(ks[7], (C, C + 1, 3, 3), jnp.float32),
        "cb2": 0.1 * jax.random.normal(ks[8], (C,), jnp.float32),
        "g3": 1.0 + 0.1 * jax.random.normal(ks[9], (C,), jnp.float32),
        "b3": 0.1 * jax.random.normal(ks[10], (C,), jnp.float32),
    }

    fwd = jax.jit(odefunc_forward)
    out = jax.block_until_ready(fwd(t, x, params))
    ref = jax.block_until_ready(ref_forward(t, x, params))

    assert out.shape == (N, C, H, W) and out.dtype == jnp.float32
    err = float(jnp.max(jnp.abs(out - ref)))
    assert jnp.allclose(out, ref, atol=1e-3, rtol=1e-3), err
    print("KERNEL_OK")
</pallas_src>

<mosaic_0001>
module attributes {stable_mosaic.version = 11 : i64} {
  func.func @odefunc_kernel(%arg0: i32, %arg1: memref<1x4x256xf32, #tpu.memory_space<vmem>>, %arg2: memref<10x256xf32, #tpu.memory_space<vmem>>, %arg3: memref<256x8xf32, #tpu.memory_space<vmem>>, %arg4: memref<4x6xf32, #tpu.memory_space<vmem>>, %arg5: memref<4x46xf32, #tpu.memory_space<vmem>>, %arg6: memref<4x46xf32, #tpu.memory_space<vmem>>, %arg7: memref<1x4x256xf32, #tpu.memory_space<vmem>>, %arg8: memref<46x256xf32, #tpu.memory_space<vmem>>) attributes {dimension_semantics = [#tpu.dimension_semantics<parallel>], iteration_bounds = array<i64: 2>, scalar_prefetch = 0 : i64, scratch_operands = 1 : i64, tpu.core_type = #tpu.core_type<tc>, window_params = [{transform_indices = @transform_0, window_bounds = array<i64: 1, 4, 256>}, {pipeline_mode = #tpu.pipeline_mode<synchronous>, transform_indices = @transform_1, window_bounds = array<i64: 10, 256>}, {pipeline_mode = #tpu.pipeline_mode<synchronous>, transform_indices = @transform_2, window_bounds = array<i64: 256, 8>}, {pipeline_mode = #tpu.pipeline_mode<synchronous>, transform_indices = @transform_3, window_bounds = array<i64: 4, 6>}, {pipeline_mode = #tpu.pipeline_mode<synchronous>, transform_indices = @transform_4, window_bounds = array<i64: 4, 46>}, {pipeline_mode = #tpu.pipeline_mode<synchronous>, transform_indices = @transform_5, window_bounds = array<i64: 4, 46>}, {transform_indices = @transform_6, window_bounds = array<i64: 1, 4, 256>}]} {
    %c0 = arith.constant 0 : index
    %c0_0 = arith.constant 0 : index
    %0 = vector.load %arg2[%c0, %c0_0] : memref<10x256xf32, #tpu.memory_space<vmem>>, vector<10x256xf32>
    %c0_1 = arith.constant 0 : index
    %c0_2 = arith.constant 0 : index
    %1 = vector.load %arg3[%c0_1, %c0_2] : memref<256x8xf32, #tpu.memory_space<vmem>>, vector<256x8xf32>
    %c0_3 = arith.constant 0 : index
    %c0_4 = arith.constant 0 : index
    %2 = vector.load %arg4[%c0_3, %c0_4] : memref<4x6xf32, #tpu.memory_space<vmem>>, vector<4x6xf32>
    %c36 = arith.constant 36 : index
    %c0_5 = arith.constant 0 : index
    %3 = vector.load %arg8[%c36, %c0_5] : memref<46x256xf32, #tpu.memory_space<vmem>>, vector<10x256xf32>
    tpu.vector_store %arg8[%c36, %c0_5], %0 {strides = array<i32>} : memref<46x256xf32, #tpu.memory_space<vmem>>, vector<10x256xf32>,
    %c0_i32 = arith.constant 0 : i32
    %4 = arith.index_cast %c0_i32 : i32 to index
    %c0_6 = arith.constant 0 : index
    %c0_7 = arith.constant 0 : index
    %5 = vector.load %arg1[%4, %c0_6, %c0_7] : memref<1x4x256xf32, #tpu.memory_space<vmem>>, vector<1x4x256xf32>
    %6 = vector.shape_cast %5 : vector<1x4x256xf32> to vector<4x256xf32>
    %7 = vector.extract_strided_slice %2 {offsets = [0, 0], sizes = [4, 1], strides = [1, 1]} : vector<4x6xf32> to vector<4x1xf32>
    %8 = vector.extract_strided_slice %2 {offsets = [0, 1], sizes = [4, 1], strides = [1, 1]} : vector<4x6xf32> to vector<4x1xf32>
    %cst = arith.constant dense<0.000000e+00> : vector<4x8xf32>
    %9 = tpu.matmul %6, %1, %cst {dimension_numbers = #tpu.dot_dimension_numbers<[1], [0], [0], [1], [0, 0, 1, 1], [], []>} : vector<4x256xf32>, vector<256x8xf32>, vector<4x8xf32> -> vector<4x8xf32>
    %10 = vector.extract_strided_slice %9 {offsets = [0, 0], sizes = [4, 1], strides = [1, 1]} : vector<4x8xf32> to vector<4x1xf32>
    %11 = arith.mulf %6, %6 : vector<4x256xf32>
    %cst_8 = arith.constant dense<0.000000e+00> : vector<4x8xf32>
    %12 = tpu.matmul %11, %1, %cst_8 {dimension_numbers = #tpu.dot_dimension_numbers<[1], [0], [0], [1], [0, 0, 1, 1], [], []>} : vector<4x256xf32>, vector<256x8xf32>, vector<4x8xf32> -> vector<4x8xf32>
    %13 = vector.extract_strided_slice %12 {offsets = [0, 0], sizes = [4, 1], strides = [1, 1]} : vector<4x8xf32> to vector<4x1xf32>
    %cst_9 = arith.constant 3.906250e-03 : f32
    %14 = vector.broadcast %cst_9 : f32 to vector<4x1xf32>
    %15 = arith.mulf %10, %14 : vector<4x1xf32>
    %cst_10 = arith.constant 3.906250e-03 : f32
    %16 = vector.broadcast %cst_10 : f32 to vector<4x1xf32>
    %17 = arith.mulf %13, %16 : vector<4x1xf32>
    %18 = arith.mulf %15, %15 : vector<4x1xf32>
    %19 = arith.subf %17, %18 : vector<4x1xf32>
    %cst_11 = arith.constant 0.000000e+00 : f32
    %20 = vector.broadcast %cst_11 : f32 to vector<4x1xf32>
    %21 = arith.maximumf %19, %20 : vector<4x1xf32>
    %cst_12 = arith.constant 9.99999974E-6 : f32
    %22 = vector.broadcast %cst_12 : f32 to vector<4x1xf32>
    %23 = arith.addf %21, %22 : vector<4x1xf32>
    %24 = math.rsqrt %23 : vector<4x1xf32>
    %25 = arith.mulf %7, %24 : vector<4x1xf32>
    %26 = arith.mulf %15, %25 : vector<4x1xf32>
    %27 = arith.subf %8, %26 : vector<4x1xf32>
    %28 = vector.broadcast %25 : vector<4x1xf32> to vector<4x256xf32>
    %29 = arith.mulf %6, %28 : vector<4x256xf32>
    %30 = vector.broadcast %27 : vector<4x1xf32> to vector<4x256xf32>
    %31 = arith.addf %29, %30 : vector<4x256xf32>
    %cst_13 = arith.constant 0.000000e+00 : f32
    %32 = vector.broadcast %cst_13 : f32 to vector<4x256xf32>
    %33 = arith.maximumf %31, %32 : vector<4x256xf32>
    %c17_i32 = arith.constant 17 : i32
    %34 = tpu.dynamic_rotate %33 by %c17_i32 dim 1 : vector<4x256xf32>, i32 -> vector<4x256xf32>
    %35 = vector.extract_strided_slice %0 {offsets = [0, 0], sizes = [1, 256], strides = [1, 1]} : vector<10x256xf32> to vector<1x256xf32>
    %36 = vector.broadcast %35 : vector<1x256xf32> to vector<4x256xf32>
    %37 = arith.mulf %34, %36 : vector<4x256xf32>
    %c0_14 = arith.constant 0 : index
    %c0_15 = arith.constant 0 : index
    %38 = vector.load %arg8[%c0_14, %c0_15] : memref<46x256xf32, #tpu.memory_space<vmem>>, vector<4x256xf32>
    tpu.vector_store %arg8[%c0_14, %c0_15], %37 {strides = array<i32>} : memref<46x256xf32, #tpu.memory_space<vmem>>, vector<4x256xf32>,
    %c16_i32 = arith.constant 16 : i32
    %39 = tpu.dynamic_rotate %33 by %c16_i32 dim 1 : vector<4x256xf32>, i32 -> vector<4x256xf32>
    %40 = vector.extract_strided_slice %0 {offsets = [1, 0], sizes = [1, 256], strides = [1, 1]} : vector<10x256xf32> to vector<1x256xf32>
    %41 = vector.broadcast %40 : vector<1x256xf32> to vector<4x256xf32>
    %42 = arith.mulf %39, %41 : vector<4x256xf32>
    %c4 = arith.constant 4 : index
    %c0_16 = arith.constant 0 : index
    %43 = vector.load %arg8[%c4, %c0_16] : memref<46x256xf32, #tpu.memory_space<vmem>>, vector<4x256xf32>
    tpu.vector_store %arg8[%c4, %c0_16], %42 {strides = array<i32>} : memref<46x256xf32, #tpu.memory_space<vmem>>, vector<4x256xf32>,
    %c15_i32 = arith.constant 15 : i32
    %44 = tpu.dynamic_rotate %33 by %c15_i32 dim 1 : vector<4x256xf32>, i32 -> vector<4x256xf32>
    %45 = vector.extract_strided_slice %0 {offsets = [2, 0], sizes = [1, 256], strides = [1, 1]} : vector<10x256xf32> to vector<1x256xf32>
    %46 = vector.broadcast %45 : vector<1x256xf32> to vector<4x256xf32>
    %47 = arith.mulf %44, %46 : vector<4x256xf32>
    %c8 = arith.constant 8 : index
    %c0_17 = arith.constant 0 : index
    %48 = vector.load %arg8[%c8, %c0_17] : memref<46x256xf32, #tpu.memory_space<vmem>>, vector<4x256xf32>
    tpu.vector_store %arg8[%c8, %c0_17], %47 {strides = array<i32>} : memref<46x256xf32, #tpu.memory_space<vmem>>, vector<4x256xf32>,
    %c1_i32 = arith.constant 1 : i32
    %49 = tpu.dynamic_rotate %33 by %c1_i32 dim 1 : vector<4x256xf32>, i32 -> vector<4x256xf32>
    %50 = vector.extract_strided_slice %0 {offsets = [3, 0], sizes = [1, 256], strides = [1, 1]} : vector<10x256xf32> to vector<1x256xf32>
    %51 = vector.broadcast %50 : vector<1x256xf32> to vector<4x256xf32>
    %52 = arith.mulf %49, %51 : vector<4x256xf32>
    %c12 = arith.constant 12 : index
    %c0_18 = arith.constant 0 : index
    %53 = vector.load %arg8[%c12, %c0_18] : memref<46x256xf32, #tpu.memory_space<vmem>>, vector<4x256xf32>
    tpu.vector_store %arg8[%c12, %c0_18], %52 {strides = array<i32>} : memref<46x256xf32, #tpu.memory_space<vmem>>, vector<4x256xf32>,
    %54 = vector.extract_strided_slice %0 {offsets = [4, 0], sizes = [1, 256], strides = [1, 1]} : vector<10x256xf32> to vector<1x256xf32>
    %55 = vector.broadcast %54 : vector<1x256xf32> to vector<4x256xf32>
    %56 = arith.mulf %33, %55 : vector<4x256xf32>
    %c16 = arith.constant 16 : index
    %c0_19 = arith.constant 0 : index
    %57 = vector.load %arg8[%c16, %c0_19] : memref<46x256xf32, #tpu.memory_space<vmem>>, vector<4x256xf32>
    tpu.vector_store %arg8[%c16, %c0_19], %56 {strides = array<i32>} : memref<46x256xf32, #tpu.memory_space<vmem>>, vector<4x256xf32>,
    %c255_i32 = arith.constant 255 : i32
    %58 = tpu.dynamic_rotate %33 by %c255_i32 dim 1 : vector<4x256xf32>, i32 -> vector<4x256xf32>
    %59 = vector.extract_strided_slice %0 {offsets = [5, 0], sizes = [1, 256], strides = [1, 1]} : vector<10x256xf32> to vector<1x256xf32>
    %60 = vector.broadcast %59 : vector<1x256xf32> to vector<4x256xf32>
    %61 = arith.mulf %58, %60 : vector<4x256xf32>
    %c20 = arith.constant 20 : index
    %c0_20 = arith.constant 0 : index
    %62 = vector.load %arg8[%c20, %c0_20] : memref<46x256xf32, #tpu.memory_space<vmem>>, vector<4x256xf32>
    tpu.vector_store %arg8[%c20, %c0_20], %61 {strides = array<i32>} : memref<46x256xf32, #tpu.memory_space<vmem>>, vector<4x256xf32>,
    %c241_i32 = arith.constant 241 : i32
    %63 = tpu.dynamic_rotate %33 by %c241_i32 dim 1 : vector<4x256xf32>, i32 -> vector<4x256xf32>
    %64 = vector.extract_strided_slice %0 {offsets = [6, 0], sizes = [1, 256], strides = [1, 1]} : vector<10x256xf32> to vector<1x256xf32>
    %65 = vector.broadcast %64 : vector<1x256xf32> to vector<4x256xf32>
    %66 = arith.mulf %63, %65 : vector<4x256xf32>
    %c24 = arith.constant 24 : index
    %c0_21 = arith.constant 0 : index
    %67 = vector.load %arg8[%c24, %c0_21] : memref<46x256xf32, #tpu.memory_space<vmem>>, vector<4x256xf32>
    tpu.vector_store %arg8[%c24, %c0_21], %66 {strides = array<i32>} : memref<46x256xf32, #tpu.memory_space<vmem>>, vector<4x256xf32>,
    %c240_i32 = arith.constant 240 : i32
    %68 = tpu.dynamic_rotate %33 by %c240_i32 dim 1 : vector<4x256xf32>, i32 -> vector<4x256xf32>
    %69 = vector.extract_strided_slice %0 {offsets = [7, 0], sizes = [1, 256], strides = [1, 1]} : vector<10x256xf32> to vector<1x256xf32>
    %70 = vector.broadcast %69 : vector<1x256xf32> to vector<4x256xf32>
    %71 = arith.mulf %68, %70 : vector<4x256xf32>
    %c28 = arith.constant 28 : index
    %c0_22 = arith.constant 0 : index
    %72 = vector.load %arg8[%c28, %c0_22] : memref<46x256xf32, #tpu.memory_space<vmem>>, vector<4x256xf32>
    tpu.vector_store %arg8[%c28, %c0_22], %71 {strides = array<i32>} : memref<46x256xf32, #tpu.memory_space<vmem>>, vector<4x256xf32>,
    %c239_i32 = arith.constant 239 : i32
    %73 = tpu.dynamic_rotate %33 by %c239_i32 dim 1 : vector<4x256xf32>, i32 -> vector<4x256xf32>
    %74 = vector.extract_strided_slice %0 {offsets = [8, 0], sizes = [1, 256], strides = [1, 1]} : vector<10x256xf32> to vector<1x256xf32>
    %75 = vector.broadcast %74 : vector<1x256xf32> to vector<4x256xf32>
    %76 = arith.mulf %73, %75 : vector<4x256xf32>
    %c32 = arith.constant 32 : index
    %c0_23 = arith.constant 0 : index
    %77 = vector.load %arg8[%c32, %c0_23] : memref<46x256xf32, #tpu.memory_space<vmem>>, vector<4x256xf32>
    tpu.vector_store %arg8[%c32, %c0_23], %76 {strides = array<i32>} : memref<46x256xf32, #tpu.memory_space<vmem>>, vector<4x256xf32>,
    %c0_24 = arith.constant 0 : index
    %c0_25 = arith.constant 0 : index
    %78 = vector.load %arg5[%c0_24, %c0_25] : memref<4x46xf32, #tpu.memory_space<vmem>>, vector<4x46xf32>
    %c0_26 = arith.constant 0 : index
    %c0_27 = arith.constant 0 : index
    %79 = vector.load %arg8[%c0_26, %c0_27] : memref<46x256xf32, #tpu.memory_space<vmem>>, vector<46x256xf32>
    %cst_28 = arith.constant dense<0.000000e+00> : vector<4x256xf32>
    %80 = tpu.matmul %78, %79, %cst_28 {dimension_numbers = #tpu.dot_dimension_numbers<[1], [0], [0], [1], [0, 0, 1, 1], [], []>} : vector<4x46xf32>, vector<46x256xf32>, vector<4x256xf32> -> vector<4x256xf32>
    %81 = vector.extract_strided_slice %2 {offsets = [0, 2], sizes = [4, 1], strides = [1, 1]} : vector<4x6xf32> to vector<4x1xf32>
    %82 = vector.extract_strided_slice %2 {offsets = [0, 3], sizes = [4, 1], strides = [1, 1]} : vector<4x6xf32> to vector<4x1xf32>
    %cst_29 = arith.constant dense<0.000000e+00> : vector<4x8xf32>
    %83 = tpu.matmul %80, %1, %cst_29 {dimension_numbers = #tpu.dot_dimension_numbers<[1], [0], [0], [1], [0, 0, 1, 1], [], []>} : vector<4x256xf32>, vector<256x8xf32>, vector<4x8xf32> -> vector<4x8xf32>
    %84 = vector.extract_strided_slice %83 {offsets = [0, 0], sizes = [4, 1], strides = [1, 1]} : vector<4x8xf32> to vector<4x1xf32>
    %85 = arith.mulf %80, %80 : vector<4x256xf32>
    %cst_30 = arith.constant dense<0.000000e+00> : vector<4x8xf32>
    %86 = tpu.matmul %85, %1, %cst_30 {dimension_numbers = #tpu.dot_dimension_numbers<[1], [0], [0], [1], [0, 0, 1, 1], [], []>} : vector<4x256xf32>, vector<256x8xf32>, vector<4x8xf32> -> vector<4x8xf32>
    %87 = vector.extract_strided_slice %86 {offsets = [0, 0], sizes = [4, 1], strides = [1, 1]} : vector<4x8xf32> to vector<4x1xf32>
    %cst_31 = arith.constant 3.906250e-03 : f32
    %88 = vector.broadcast %cst_31 : f32 to vector<4x1xf32>
    %89 = arith.mulf %84, %88 : vector<4x1xf32>
    %cst_32 = arith.constant 3.906250e-03 : f32
    %90 = vector.broadcast %cst_32 : f32 to vector<4x1xf32>
    %91 = arith.mulf %87, %90 : vector<4x1xf32>
    %92 = arith.mulf %89, %89 : vector<4x1xf32>
    %93 = arith.subf %91, %92 : vector<4x1xf32>
    %cst_33 = arith.constant 0.000000e+00 : f32
    %94 = vector.broadcast %cst_33 : f32 to vector<4x1xf32>
    %95 = arith.maximumf %93, %94 : vector<4x1xf32>
    %cst_34 = arith.constant 9.99999974E-6 : f32
    %96 = vector.broadcast %cst_34 : f32 to vector<4x1xf32>
    %97 = arith.addf %95, %96 : vector<4x1xf32>
    %98 = math.rsqrt %97 : vector<4x1xf32>
    %99 = arith.mulf %81, %98 : vector<4x1xf32>
    %100 = arith.mulf %89, %99 : vector<4x1xf32>
    %101 = arith.subf %82, %100 : vector<4x1xf32>
    %102 = vector.broadcast %99 : vector<4x1xf32> to vector<4x256xf32>
    %103 = arith.mulf %80, %102 : vector<4x256xf32>
    %104 = vector.broadcast %101 : vector<4x1xf32> to vector<4x256xf32>
    %105 = arith.addf %103, %104 : vector<4x256xf32>
    %cst_35 = arith.constant 0.000000e+00 : f32
    %106 = vector.broadcast %cst_35 : f32 to vector<4x256xf32>
    %107 = arith.maximumf %105, %106 : vector<4x256xf32>
    %c17_i32_36 = arith.constant 17 : i32
    %108 = tpu.dynamic_rotate %107 by %c17_i32_36 dim 1 : vector<4x256xf32>, i32 -> vector<4x256xf32>
    %109 = vector.extract_strided_slice %0 {offsets = [0, 0], sizes = [1, 256], strides = [1, 1]} : vector<10x256xf32> to vector<1x256xf32>
    %110 = vector.broadcast %109 : vector<1x256xf32> to vector<4x256xf32>
    %111 = arith.mulf %108, %110 : vector<4x256xf32>
    %c0_37 = arith.constant 0 : index
    %c0_38 = arith.constant 0 : index
    %112 = vector.load %arg8[%c0_37, %c0_38] : memref<46x256xf32, #tpu.memory_space<vmem>>, vector<4x256xf32>
    tpu.vector_store %arg8[%c0_37, %c0_38], %111 {strides = array<i32>} : memref<46x256xf32, #tpu.memory_space<vmem>>, vector<4x256xf32>,
    %c16_i32_39 = arith.constant 16 : i32
    %113 = tpu.dynamic_rotate %107 by %c16_i32_39 dim 1 : vector<4x256xf32>, i32 -> vector<4x256xf32>
    %114 = vector.extract_strided_slice %0 {offsets = [1, 0], sizes = [1, 256], strides = [1, 1]} : vector<10x256xf32> to vector<1x256xf32>
    %115 = vector.broadcast %114 : vector<1x256xf32> to vector<4x256xf32>
    %116 = arith.mulf %113, %115 : vector<4x256xf32>
    %c4_40 = arith.constant 4 : index
    %c0_41 = arith.constant 0 : index
    %117 = vector.load %arg8[%c4_40, %c0_41] : memref<46x256xf32, #tpu.memory_space<vmem>>, vector<4x256xf32>
    tpu.vector_store %arg8[%c4_40, %c0_41], %116 {strides = array<i32>} : memref<46x256xf32, #tpu.memory_space<vmem>>, vector<4x256xf32>,
    %c15_i32_42 = arith.constant 15 : i32
    %118 = tpu.dynamic_rotate %107 by %c15_i32_42 dim 1 : vector<4x256xf32>, i32 -> vector<4x256xf32>
    %119 = vector.extract_strided_slice %0 {offsets = [2, 0], sizes = [1, 256], strides = [1, 1]} : vector<10x256xf32> to vector<1x256xf32>
    %120 = vector.broadcast %119 : vector<1x256xf32> to vector<4x256xf32>
    %121 = arith.mulf %118, %120 : vector<4x256xf32>
    %c8_43 = arith.constant 8 : index
    %c0_44 = arith.constant 0 : index
    %122 = vector.load %arg8[%c8_43, %c0_44] : memref<46x256xf32, #tpu.memory_space<vmem>>, vector<4x256xf32>
    tpu.vector_store %arg8[%c8_43, %c0_44], %121 {strides = array<i32>} : memref<46x256xf32, #tpu.memory_space<vmem>>, vector<4x256xf32>,
    %c1_i32_45 = arith.constant 1 : i32
    %123 = tpu.dynamic_rotate %107 by %c1_i32_45 dim 1 : vector<4x256xf32>, i32 -> vector<4x256xf32>
    %124 = vector.extract_strided_slice %0 {offsets = [3, 0], sizes = [1, 256], strides = [1, 1]} : vector<10x256xf32> to vector<1x256xf32>
    %125 = vector.broadcast %124 : vector<1x256xf32> to vector<4x256xf32>
    %126 = arith.mulf %123, %125 : vector<4x256xf32>
    %c12_46 = arith.constant 12 : index
    %c0_47 = arith.constant 0 : index
    %127 = vector.load %arg8[%c12_46, %c0_47] : memref<46x256xf32, #tpu.memory_space<vmem>>, vector<4x256xf32>
    tpu.vector_store %arg8[%c12_46, %c0_47], %126 {strides = array<i32>} : memref<46x256xf32, #tpu.memory_space<vmem>>, vector<4x256xf32>,
    %128 = vector.extract_strided_slice %0 {offsets = [4, 0], sizes = [1, 256], strides = [1, 1]} : vector<10x256xf32> to vector<1x256xf32>
    %129 = vector.broadcast %128 : vector<1x256xf32> to vector<4x256xf32>
    %130 = arith.mulf %107, %129 : vector<4x256xf32>
    %c16_48 = arith.constant 16 : index
    %c0_49 = arith.constant 0 : index
    %131 = vector.load %arg8[%c16_48, %c0_49] : memref<46x256xf32, #tpu.memory_space<vmem>>, vector<4x256xf32>
    tpu.vector_store %arg8[%c16_48, %c0_49], %130 {strides = array<i32>} : memref<46x256xf32, #tpu.memory_space<vmem>>, vector<4x256xf32>,
    %c255_i32_50 = arith.constant 255 : i32
    %132 = tpu.dynamic_rotate %107 by %c255_i32_50 dim 1 : vector<4x256xf32>, i32 -> vector<4x256xf32>
    %133 = vector.extract_strided_slice %0 {offsets = [5, 0], sizes = [1, 256], strides = [1, 1]} : vector<10x256xf32> to vector<1x256xf32>
    %134 = vector.broadcast %133 : vector<1x256xf32> to vector<4x256xf32>
    %135 = arith.mulf %132, %134 : vector<4x256xf32>
    %c20_51 = arith.constant 20 : index
    %c0_52 = arith.constant 0 : index
    %136 = vector.load %arg8[%c20_51, %c0_52] : memref<46x256xf32, #tpu.memory_space<vmem>>, vector<4x256xf32>
    tpu.vector_store %arg8[%c20_51, %c0_52], %135 {strides = array<i32>} : memref<46x256xf32, #tpu.memory_space<vmem>>, vector<4x256xf32>,
    %c241_i32_53 = arith.constant 241 : i32
    %137 = tpu.dynamic_rotate %107 by %c241_i32_53 dim 1 : vector<4x256xf32>, i32 -> vector<4x256xf32>
    %138 = vector.extract_strided_slice %0 {offsets = [6, 0], sizes = [1, 256], strides = [1, 1]} : vector<10x256xf32> to vector<1x256xf32>
    %139 = vector.broadcast %138 : vector<1x256xf32> to vector<4x256xf32>
    %140 = arith.mulf %137, %139 : vector<4x256xf32>
    %c24_54 = arith.constant 24 : index
    %c0_55 = arith.constant 0 : index
    %141 = vector.load %arg8[%c24_54, %c0_55] : memref<46x256xf32, #tpu.memory_space<vmem>>, vector<4x256xf32>
    tpu.vector_store %arg8[%c24_54, %c0_55], %140 {strides = array<i32>} : memref<46x256xf32, #tpu.memory_space<vmem>>, vector<4x256xf32>,
    %c240_i32_56 = arith.constant 240 : i32
    %142 = tpu.dynamic_rotate %107 by %c240_i32_56 dim 1 : vector<4x256xf32>, i32 -> vector<4x256xf32>
    %143 = vector.extract_strided_slice %0 {offsets = [7, 0], sizes = [1, 256], strides = [1, 1]} : vector<10x256xf32> to vector<1x256xf32>
    %144 = vector.broadcast %143 : vector<1x256xf32> to vector<4x256xf32>
    %145 = arith.mulf %142, %144 : vector<4x256xf32>
    %c28_57 = arith.constant 28 : index
    %c0_58 = arith.constant 0 : index
    %146 = vector.load %arg8[%c28_57, %c0_58] : memref<46x256xf32, #tpu.memory_space<vmem>>, vector<4x256xf32>
    tpu.vector_store %arg8[%c28_57, %c0_58], %145 {strides = array<i32>} : memref<46x256xf32, #tpu.memory_space<vmem>>, vector<4x256xf32>,
    %c239_i32_59 = arith.constant 239 : i32
    %147 = tpu.dynamic_rotate %107 by %c239_i32_59 dim 1 : vector<4x256xf32>, i32 -> vector<4x256xf32>
    %148 = vector.extract_strided_slice %0 {offsets = [8, 0], sizes = [1, 256], strides = [1, 1]} : vector<10x256xf32> to vector<1x256xf32>
    %149 = vector.broadcast %148 : vector<1x256xf32> to vector<4x256xf32>
    %150 = arith.mulf %147, %149 : vector<4x256xf32>
    %c32_60 = arith.constant 32 : index
    %c0_61 = arith.constant 0 : index
    %151 = vector.load %arg8[%c32_60, %c0_61] : memref<46x256xf32, #tpu.memory_space<vmem>>, vector<4x256xf32>
    tpu.vector_store %arg8[%c32_60, %c0_61], %150 {strides = array<i32>} : memref<46x256xf32, #tpu.memory_space<vmem>>, vector<4x256xf32>,
    %c0_62 = arith.constant 0 : index
    %c0_63 = arith.constant 0 : index
    %152 = vector.load %arg6[%c0_62, %c0_63] : memref<4x46xf32, #tpu.memory_space<vmem>>, vector<4x46xf32>
    %c0_64 = arith.constant 0 : index
    %c0_65 = arith.constant 0 : index
    %153 = vector.load %arg8[%c0_64, %c0_65] : memref<46x256xf32, #tpu.memory_space<vmem>>, vector<46x256xf32>
    %cst_66 = arith.constant dense<0.000000e+00> : vector<4x256xf32>
    %154 = tpu.matmul %152, %153, %cst_66 {dimension_numbers = #tpu.dot_dimension_numbers<[1], [0], [0], [1], [0, 0, 1, 1], [], []>} : vector<4x46xf32>, vector<46x256xf32>, vector<4x256xf32> -> vector<4x256xf32>
    %155 = vector.extract_strided_slice %2 {offsets = [0, 4], sizes = [4, 1], strides = [1, 1]} : vector<4x6xf32> to vector<4x1xf32>
    %156 = vector.extract_strided_slice %2 {offsets = [0, 5], sizes = [4, 1], strides = [1, 1]} : vector<4x6xf32> to vector<4x1xf32>
    %cst_67 = arith.constant dense<0.000000e+00> : vector<4x8xf32>
    %157 = tpu.matmul %154, %1, %cst_67 {dimension_numbers = #tpu.dot_dimension_numbers<[1], [0], [0], [1], [0, 0, 1, 1], [], []>} : vector<4x256xf32>, vector<256x8xf32>, vector<4x8xf32> -> vector<4x8xf32>
    %158 = vector.extract_strided_slice %157 {offsets = [0, 0], sizes = [4, 1], strides = [1, 1]} : vector<4x8xf32> to vector<4x1xf32>
    %159 = arith.mulf %154, %154 : vector<4x256xf32>
    %cst_68 = arith.constant dense<0.000000e+00> : vector<4x8xf32>
    %160 = tpu.matmul %159, %1, %cst_68 {dimension_numbers = #tpu.dot_dimension_numbers<[1], [0], [0], [1], [0, 0, 1, 1], [], []>} : vector<4x256xf32>, vector<256x8xf32>, vector<4x8xf32> -> vector<4x8xf32>
    %161 = vector.extract_strided_slice %160 {offsets = [0, 0], sizes = [4, 1], strides = [1, 1]} : vector<4x8xf32> to vector<4x1xf32>
    %cst_69 = arith.constant 3.906250e-03 : f32
    %162 = vector.broadcast %cst_69 : f32 to vector<4x1xf32>
    %163 = arith.mulf %158, %162 : vector<4x1xf32>
    %cst_70 = arith.constant 3.906250e-03 : f32
    %164 = vector.broadcast %cst_70 : f32 to vector<4x1xf32>
    %165 = arith.mulf %161, %164 : vector<4x1xf32>
    %166 = arith.mulf %163, %163 : vector<4x1xf32>
    %167 = arith.subf %165, %166 : vector<4x1xf32>
    %cst_71 = arith.constant 0.000000e+00 : f32
    %168 = vector.broadcast %cst_71 : f32 to vector<4x1xf32>
    %169 = arith.maximumf %167, %168 : vector<4x1xf32>
    %cst_72 = arith.constant 9.99999974E-6 : f32
    %170 = vector.broadcast %cst_72 : f32 to vector<4x1xf32>
    %171 = arith.addf %169, %170 : vector<4x1xf32>
    %172 = math.rsqrt %171 : vector<4x1xf32>
    %173 = arith.mulf %155, %172 : vector<4x1xf32>
    %174 = arith.mulf %163, %173 : vector<4x1xf32>
    %175 = arith.subf %156, %174 : vector<4x1xf32>
    %176 = vector.broadcast %173 : vector<4x1xf32> to vector<4x256xf32>
    %177 = arith.mulf %154, %176 : vector<4x256xf32>
    %178 = vector.broadcast %175 : vector<4x1xf32> to vector<4x256xf32>
    %179 = arith.addf %177, %178 : vector<4x256xf32>
    %180 = arith.index_cast %c0_i32 : i32 to index
    %c0_73 = arith.constant 0 : index
    %c0_74 = arith.constant 0 : index
    %181 = vector.load %arg7[%180, %c0_73, %c0_74] : memref<1x4x256xf32, #tpu.memory_space<vmem>>, vector<1x4x256xf32>
    %182 = vector.shape_cast %181 : vector<1x4x256xf32> to vector<4x256xf32>
    %183 = vector.shape_cast %179 : vector<4x256xf32> to vector<1x4x256xf32>
    tpu.vector_store %arg7[%180, %c0_73, %c0_74], %183 {strides = array<i32>} : memref<1x4x256xf32, #tpu.memory_space<vmem>>, vector<1x4x256xf32>,
    %c1_i32_75 = arith.constant 1 : i32
    return
  }
  func.func @transform_0(%arg0: i32) -> (i32, i32, i32) {
    %c0_i32 = arith.constant 0 : i32
    %c0_i32_0 = arith.constant 0 : i32
    %c0_i32_1 = arith.constant 0 : i32
    return %arg0, %c0_i32, %c0_i32_0 : i32, i32, i32
  }
  func.func @transform_1(%arg0: i32) -> (i32, i32) {
    %c0_i32 = arith.constant 0 : i32
    %c0_i32_0 = arith.constant 0 : i32
    %c0_i32_1 = arith.constant 0 : i32
    return %c0_i32, %c0_i32_0 : i32, i32
  }
  func.func @transform_2(%arg0: i32) -> (i32, i32) {
    %c0_i32 = arith.constant 0 : i32
    %c0_i32_0 = arith.constant 0 : i32
    %c0_i32_1 = arith.constant 0 : i32
    return %c0_i32, %c0_i32_0 : i32, i32
  }
  func.func @transform_3(%arg0: i32) -> (i32, i32) {
    %c0_i32 = arith.constant 0 : i32
    %c0_i32_0 = arith.constant 0 : i32
    %c0_i32_1 = arith.constant 0 : i32
    return %c0_i32, %c0_i32_0 : i32, i32
  }
  func.func @transform_4(%arg0: i32) -> (i32, i32) {
    %c0_i32 = arith.constant 0 : i32
    %c0_i32_0 = arith.constant 0 : i32
    %c0_i32_1 = arith.constant 0 : i32
    return %c0_i32, %c0_i32_0 : i32, i32
  }
  func.func @transform_5(%arg0: i32) -> (i32, i32) {
    %c0_i32 = arith.constant 0 : i32
    %c0_i32_0 = arith.constant 0 : i32
    %c0_i32_1 = arith.constant 0 : i32
    return %c0_i32, %c0_i32_0 : i32, i32
  }
  func.func @transform_6(%arg0: i32) -> (i32, i32, i32) {
    %c0_i32 = arith.constant 0 : i32
    %c0_i32_0 = arith.constant 0 : i32
    %c0_i32_1 = arith.constant 0 : i32
    return %arg0, %c0_i32, %c0_i32_0 : i32, i32, i32
  }
}

</mosaic_0001>

<llo_original>
// kernel: odefunc_forward.1
$region0: #{odefunc_forward.1}
  #allocation0 [shape = 'u32[]', space=smem, size = 0x4, offset = 0x4, fixed_abs, tag = 'smem constant byte address 0x4 - core index']
  #allocation1 [shape = 'u32[72,128]{1,0:T(1,128)}', space=vmem, size = 0x9000, scoped, tag = 'internal scratch']
  #allocation2 [shape = 'f32[46,256]{1,0:T(8,128)}', space=vmem, size = 0xc000, scoped, tag = 'scratch operand']
  %s0 = inlined_call_operand.vmem [shape: f32[2,4,256], index: 0, kind: input, shape index: {}]
  %s1 = inlined_call_operand.vmem [shape: f32[10,256], index: 1, kind: input, shape index: {}]
  %s2 = inlined_call_operand.vmem [shape: f32[256,8], index: 2, kind: input, shape index: {}]
  %s3 = inlined_call_operand.vmem [shape: f32[4,6], index: 3, kind: input, shape index: {}]
  %s4 = inlined_call_operand.vmem [shape: f32[4,46], index: 4, kind: input, shape index: {}]
  %s5 = inlined_call_operand.vmem [shape: f32[4,46], index: 5, kind: input, shape index: {}]
  %s6 = inlined_call_operand.vmem [shape: f32[2,4,256], index: 6, kind: output, shape index: {}]
  %s7 = sld [smem:[#allocation0]]
  $region57: #{odefunc_forward.1} parent=0
    _
  %s9 = ssub.s32 1, %s7
  %s10 = scalar_select 0, %s9, %s7
  loop: start=0, step=1, limit=4
  $region2: #{odefunc_forward.1} parent=0 // loop_pre_header
    _
  $region3: #{odefunc_forward.1} parent=0 // loop_header
    %s12 = sphi 0, %s16
    %p13 = scmp.ge.s32.totalorder %s12, 4
    %s22 = sphi 0, %s24
    %s25 = sphi 0, %s22
    %s26 = sphi 0, %s25
    %s42 = sphi 0, %s26
    %s46 = sphi 0, %s46
    %s48 = sphi 0, %s46
    %s49 = sphi 0, %s48
    %s63 = sphi 0, %s49
    %s67 = sphi 0, %s67
    %s69 = sphi 0, %s67
    %s70 = sphi 0, %s69
    %s84 = sphi 0, %s70
    %s88 = sphi 0, %s88
    %s90 = sphi 0, %s88
    %s91 = sphi 0, %s90
    %s105 = sphi 0, %s91
    %s109 = sphi 0, %s109
    %s111 = sphi 0, %s109
    %s112 = sphi 0, %s111
    %s126 = sphi 0, %s112
    %s130 = sphi 0, %s130
    %s132 = sphi 0, %s130
    %s133 = sphi 0, %s132
    %s147 = sphi 0, %s133
    %s153 = sphi 0, %s155
    %s156 = sphi 0, %s153
    %s157 = sphi 0, %s156
    %s173 = sphi 0, %s157
  $region4: #{odefunc_forward.1} parent=0 // loop_header_branch
    %15 = sbr.rel (%p13) target = $region8
  $region5: #{odefunc_forward.1} parent=0 // loop_body
    %s17 = ssub.s32 %s12, 1
    %s18 = ssub.s32 %s12, 2
    %s19 = sadd.s32 %s12, 1
    %s20 = ssub.s32 %s12, %s19
    %p21 = scmp.eq.s32.totalorder %s20, 0
    %s23 = sadd.s32 %s22, 1
    %s24 = scalar_select %p21, %s22, %s23
    %p27 = pneg %p21
    %p28 = scmp.eq.s32.totalorder %s12, 1
    %p29 = por %p27, %p28
    %p30 = scmp.ne.s32.totalorder %s22, %s25
    %p31 = scmp.eq.s32.totalorder %s12, 0
    %p32 = por %p30, %p31
    %p33 = scmp.ne.s32.totalorder %s22, %s25
    %p34 = scmp.eq.s32.totalorder %s17, 1
    %p35 = por %p33, %p34
    %p36 = scmp.ne.s32.totalorder %s25, %s26
    %p37 = scmp.eq.s32.totalorder %s17, 0
    %p38 = por %p36, %p37
    %p39 = scmp.ne.s32.totalorder %s25, %s26
    %p40 = scmp.eq.s32.totalorder %s18, 1
    %p41 = por %p39, %p40
    %p43 = scmp.ne.s32.totalorder %s26, %s42
    %p44 = scmp.eq.s32.totalorder %s18, 0
    %p45 = por %p43, %p44
    %s47 = sadd.s32 %s46, 1
    %p50 = scmp.eq.s32.totalorder %s12, 1
    %p51 = scmp.ne.s32.totalorder %s46, %s48
    %p52 = scmp.eq.s32.totalorder %s12, 0
    %p53 = por %p51, %p52
    %p54 = scmp.ne.s32.totalorder %s46, %s48
    %p55 = scmp.eq.s32.totalorder %s17, 1
    %p56 = por %p54, %p55
    %p57 = scmp.ne.s32.totalorder %s48, %s49
    %p58 = scmp.eq.s32.totalorder %s17, 0
    %p59 = por %p57, %p58
    %p60 = scmp.ne.s32.totalorder %s48, %s49
    %p61 = scmp.eq.s32.totalorder %s18, 1
    %p62 = por %p60, %p61
    %p64 = scmp.ne.s32.totalorder %s49, %s63
    %p65 = scmp.eq.s32.totalorder %s18, 0
    %p66 = por %p64, %p65
    %s68 = sadd.s32 %s67, 1
    %p71 = scmp.eq.s32.totalorder %s12, 1
    %p72 = scmp.ne.s32.totalorder %s67, %s69
    %p73 = scmp.eq.s32.totalorder %s12, 0
    %p74 = por %p72, %p73
    %p75 = scmp.ne.s32.totalorder %s67, %s69
    %p76 = scmp.eq.s32.totalorder %s17, 1
    %p77 = por %p75, %p76
    %p78 = scmp.ne.s32.totalorder %s69, %s70
    %p79 = scmp.eq.s32.totalorder %s17, 0
    %p80 = por %p78, %p79
    %p81 = scmp.ne.s32.totalorder %s69, %s70
    %p82 = scmp.eq.s32.totalorder %s18, 1
    %p83 = por %p81, %p82
    %p85 = scmp.ne.s32.totalorder %s70, %s84
    %p86 = scmp.eq.s32.totalorder %s18, 0
    %p87 = por %p85, %p86
    %s89 = sadd.s32 %s88, 1
    %p92 = scmp.eq.s32.totalorder %s12, 1
    %p93 = scmp.ne.s32.totalorder %s88, %s90
    %p94 = scmp.eq.s32.totalorder %s12, 0
    %p95 = por %p93, %p94
    %p96 = scmp.ne.s32.totalorder %s88, %s90
    %p97 = scmp.eq.s32.totalorder %s17, 1
    %p98 = por %p96, %p97
    %p99 = scmp.ne.s32.totalorder %s90, %s91
    %p100 = scmp.eq.s32.totalorder %s17, 0
    %p101 = por %p99, %p100
    %p102 = scmp.ne.s32.totalorder %s90, %s91
    %p103 = scmp.eq.s32.totalorder %s18, 1
    %p104 = por %p102, %p103
    %p106 = scmp.ne.s32.totalorder %s91, %s105
    %p107 = scmp.eq.s32.totalorder %s18, 0
    %p108 = por %p106, %p107
    %s110 = sadd.s32 %s109, 1
    %p113 = scmp.eq.s32.totalorder %s12, 1
    %p114 = scmp.ne.s32.totalorder %s109, %s111
    %p115 = scmp.eq.s32.totalorder %s12, 0
    %p116 = por %p114, %p115
    %p117 = scmp.ne.s32.totalorder %s109, %s111
    %p118 = scmp.eq.s32.totalorder %s17, 1
    %p119 = por %p117, %p118
    %p120 = scmp.ne.s32.totalorder %s111, %s112
    %p121 = scmp.eq.s32.totalorder %s17, 0
    %p122 = por %p120, %p121
    %p123 = scmp.ne.s32.totalorder %s111, %s112
    %p124 = scmp.eq.s32.totalorder %s18, 1
    %p125 = por %p123, %p124
    %p127 = scmp.ne.s32.totalorder %s112, %s126
    %p128 = scmp.eq.s32.totalorder %s18, 0
    %p129 = por %p127, %p128
    %s131 = sadd.s32 %s130, 1
    %p134 = scmp.eq.s32.totalorder %s12, 1
    %p135 = scmp.ne.s32.totalorder %s130, %s132
    %p136 = scmp.eq.s32.totalorder %s12, 0
    %p137 = por %p135, %p136
    %p138 = scmp.ne.s32.totalorder %s130, %s132
    %p139 = scmp.eq.s32.totalorder %s17, 1
    %p140 = por %p138, %p139
    %p141 = scmp.ne.s32.totalorder %s132, %s133
    %p142 = scmp.eq.s32.totalorder %s17, 0
    %p143 = por %p141, %p142
    %p144 = scmp.ne.s32.totalorder %s132, %s133
    %p145 = scmp.eq.s32.totalorder %s18, 1
    %p146 = por %p144, %p145
    %p148 = scmp.ne.s32.totalorder %s133, %s147
    %p149 = scmp.eq.s32.totalorder %s18, 0
    %p150 = por %p148, %p149
    %s151 = ssub.s32 %s12, %s19
    %p152 = scmp.eq.s32.totalorder %s151, 0
    %s154 = sadd.s32 %s153, 1
    %s155 = scalar_select %p152, %s153, %s154
    %p158 = pneg %p152
    %p159 = scmp.eq.s32.totalorder %s12, 1
    %p160 = por %p158, %p159
    %p161 = scmp.ne.s32.totalorder %s153, %s156
    %p162 = scmp.eq.s32.totalorder %s12, 0
    %p163 = por %p161, %p162
    %p164 = scmp.ne.s32.totalorder %s153, %s156
    %p165 = scmp.eq.s32.totalorder %s17, 1
    %p166 = por %p164, %p165
    %p167 = scmp.ne.s32.totalorder %s156, %s157
    %p168 = scmp.eq.s32.totalorder %s17, 0
    %p169 = por %p167, %p168
    %p170 = scmp.ne.s32.totalorder %s156, %s157
    %p171 = scmp.eq.s32.totalorder %s18, 1
    %p172 = por %p170, %p171
    %p174 = scmp.ne.s32.totalorder %s157, %s173
    %p175 = scmp.eq.s32.totalorder %s18, 0
    %p176 = por %p174, %p175
    %p177 = scmp.le.s32.totalorder 1, %s12
    %p178 = scmp.lt.s32.totalorder %s12, 3
    %p179 = pnand %p177, %p178
    %p180 = pneg %p179
    // Predicated region
    $region9: #{odefunc_forward.1} parent=5 // pred_check
      _
    $region10: #{odefunc_forward.1} parent=5 // pred_check_branch
      %182 = sbr.rel (%p179) target = $region12
    $region11: #{odefunc_forward.1} parent=5 // pred_region
      %s183 = ssub.s32 %s12, 1
      // Predicated region
      $region13: #{odefunc_forward.1} parent=11 // pred_check
        %p184 = pneg %p59
      $region14: #{odefunc_forward.1} parent=11 // pred_check_branch
        %186 = sbr.rel (%p184) target = $region16
      $region15: #{odefunc_forward.1} parent=11 // pred_region
        _
      $region16: #{odefunc_forward.1} parent=11 // pred_fallthru
        _
      // Predicated region
      $region17: #{odefunc_forward.1} parent=11 // pred_check
        %p187 = pneg %p80
      $region18: #{odefunc_forward.1} parent=11 // pred_check_branch
        %189 = sbr.rel (%p187) target = $region20
      $region19: #{odefunc_forward.1} parent=11 // pred_region
        _
      $region20: #{odefunc_forward.1} parent=11 // pred_fallthru
        _
      // Predicated region
      $region21: #{odefunc_forward.1} parent=11 // pred_check
        %p190 = pneg %p101
      $region22: #{odefunc_forward.1} parent=11 // pred_check_branch
        %192 = sbr.rel (%p190) target = $region24
      $region23: #{odefunc_forward.1} parent=11 // pred_region
        _
      $region24: #{odefunc_forward.1} parent=11 // pred_fallthru
        _
      // Predicated region
      $region25: #{odefunc_forward.1} parent=11 // pred_check
        %p193 = pneg %p122
      $region26: #{odefunc_forward.1} parent=11 // pred_check_branch
        %195 = sbr.rel (%p193) target = $region28
      $region27: #{odefunc_forward.1} parent=11 // pred_region
        _
      $region28: #{odefunc_forward.1} parent=11 // pred_fallthru
        _
      // Predicated region
      $region29: #{odefunc_forward.1} parent=11 // pred_check
        %p196 = pneg %p143
      $region30: #{odefunc_forward.1} parent=11 // pred_check_branch
        %198 = sbr.rel (%p196) target = $region32
      $region31: #{odefunc_forward.1} parent=11 // pred_region
        _
      $region32: #{odefunc_forward.1} parent=11 // pred_fallthru
        _
    $region12: #{odefunc_forward.1} parent=5 // pred_fallthru
      _
    %p199 = scmp.lt.s32.totalorder %s12, 2
    // Predicated region
    $region33: #{odefunc_forward.1} parent=5 // pred_check
      %p200 = pneg %p199
    $region34: #{odefunc_forward.1} parent=5 // pred_check_branch
      %202 = sbr.rel (%p200) target = $region36
    $region35: #{odefunc_forward.1} parent=5 // pred_region
      // Predicated region
      $region37: #{odefunc_forward.1} parent=35 // pred_check
        %p203 = pneg %p32
      $region38: #{odefunc_forward.1} parent=35 // pred_check_branch
        %205 = sbr.rel (%p203) target = $region40
      $region39: #{odefunc_forward.1} parent=35 // pred_region
        %p206 = scmp.lt.s32.totalorder %s12, 1
        %s207 = scalar_select %p206, %s12, 1
        %s208 = smul.addr %s207, 2
        %s209 = smul.addr %s208, 4
        %s210 = scalar_lea.vmem %s0, %s209
      $region40: #{odefunc_forward.1} parent=35 // pred_fallthru
        _
    $region36: #{odefunc_forward.1} parent=5 // pred_fallthru
      _
    %p211 = scmp.le.s32.totalorder 1, %s12
    %p212 = scmp.lt.s32.totalorder %s12, 3
    %p213 = pnand %p211, %p212
    %p214 = pneg %p213
    // Predicated region
    $region41: #{odefunc_forward.1} parent=5 // pred_check
      _
    $region42: #{odefunc_forward.1} parent=5 // pred_check_branch
      %216 = sbr.rel (%p213) target = $region44
    $region43: #{odefunc_forward.1} parent=5 // pred_region
      %s217 = ssub.s32 %s12, 1
      %p218 = scmp.lt.s32.totalorder %s17, 1
      %s219 = scalar_select %p218, %s17, 1
      %s220 = smul.addr %s219, 2
      %s221 = smul.addr %s220, 4
      %s222 = scalar_lea.vmem %s0, %s221
      %p223 = pneg %p38
      %p224 = pneg %p35
      %p225 = pneg %p59
      %p226 = pneg %p56
      %p227 = pneg %p80
      %p228 = pneg %p77
      %p229 = pneg %p101
      %p230 = pneg %p98
      %p231 = pneg %p122
      %p232 = pneg %p119
      %p233 = pneg %p143
      %p234 = pneg %p140
      %p235 = pneg %p169
      %p236 = pneg %p166
      %p237 = scmp.lt.s32.totalorder %s17, 1
      %s238 = scalar_select %p237, %s17, 1
      %s239 = smul.addr %s238, 2
      %s240 = smul.addr %s239, 4
      %s241 = scalar_lea.vmem %s6, %s240
      %p242 = scmp.lt.s32.totalorder %s17, 1
      %s243 = scalar_select %p242, %s17, 1
      %s244 = smul.addr %s243, 2
      %s245 = smul.addr %s244, 4
      %s246 = scalar_lea.vmem %s0, %s245
      %p247 = scmp.lt.s32.totalorder %s17, 1
      %s248 = scalar_select %p247, %s17, 1
      %s249 = smul.addr %s248, 2
      %s250 = smul.addr %s249, 4
      %s251 = scalar_lea.vmem %s6, %s250
      %v252 = vld [vmem:[%s1] sm:$0xff]
      %v253 = vld [vmem:[%s1 + $0x8] sm:$0xff]
      %v254 = vld [vmem:[%s1 + $0x10] sm:$0x3]
      %v255 = vld [vmem:[%s1 + $0x18] sm:$0x3]
      %v256 = vld [vmem:[%s2] sm:$0xff]
      %v257 = vld [vmem:[%s2 + $0x8] sm:$0xff]
      %v258 = vld [vmem:[%s2 + $0x10] sm:$0xff]
      %v259 = vld [vmem:[%s2 + $0x18] sm:$0xff]
      %v260 = vld [vmem:[%s2 + $0x20] sm:$0xff]
      %v261 = vld [vmem:[%s2 + $0x28] sm:$0xff]
      %v262 = vld [vmem:[%s2 + $0x30] sm:$0xff]
      %v263 = vld [vmem:[%s2 + $0x38] sm:$0xff]
      %v264 = vld [vmem:[%s2 + $0x40] sm:$0xff]
      %v265 = vld [vmem:[%s2 + $0x48] sm:$0xff]
      %v266 = vld [vmem:[%s2 + $0x50] sm:$0xff]
      %v267 = vld [vmem:[%s2 + $0x58] sm:$0xff]
      %v268 = vld [vmem:[%s2 + $0x60] sm:$0xff]
      %v269 = vld [vmem:[%s2 + $0x68] sm:$0xff]
      %v270 = vld [vmem:[%s2 + $0x70] sm:$0xff]
      %v271 = vld [vmem:[%s2 + $0x78] sm:$0xff]
      %v272 = vld [vmem:[%s2 + $0x80] sm:$0xff]
      %v273 = vld [vmem:[%s2 + $0x88] sm:$0xff]
      %v274 = vld [vmem:[%s2 + $0x90] sm:$0xff]
      %v275 = vld [vmem:[%s2 + $0x98] sm:$0xff]
      %v276 = vld [vmem:[%s2 + $0xa0] sm:$0xff]
      %v277 = vld [vmem:[%s2 + $0xa8] sm:$0xff]
      %v278 = vld [vmem:[%s2 + $0xb0] sm:$0xff]
      %v279 = vld [vmem:[%s2 + $0xb8] sm:$0xff]
      %v280 = vld [vmem:[%s2 + $0xc0] sm:$0xff]
      %v281 = vld [vmem:[%s2 + $0xc8] sm:$0xff]
      %v282 = vld [vmem:[%s2 + $0xd0] sm:$0xff]
      %v283 = vld [vmem:[%s2 + $0xd8] sm:$0xff]
      %v284 = vld [vmem:[%s2 + $0xe0] sm:$0xff]
      %v285 = vld [vmem:[%s2 + $0xe8] sm:$0xff]
      %v286 = vld [vmem:[%s2 + $0xf0] sm:$0xff]
      %v287 = vld [vmem:[%s2 + $0xf8] sm:$0xff]
      %v288 = vld [vmem:[%s3] sm:$0xf]
      %vm293 = vcmask 1043456
      %v294 = vrot.slane %v252, 4
      %v295 = vrot.slane %v253, 4
      %v296 = vrot.slane %v254, 4
      %v297 = vsel %vm293, %v294, %v296
      %v298 = vrot.slane %v255, 4
      %v299 = vsel %vm293, %v295, %v298
      %304 = vst [vmem:[#allocation2 + $0x40] sm:$0xf0] %v294
      %305 = vst [vmem:[#allocation2 + $0x48] sm:$0xf0] %v295
      %306 = vst [vmem:[#allocation2 + $0x50] sm:$0x3f] %v297
      %307 = vst [vmem:[#allocation2 + $0x58] sm:$0x3f] %v299
      %v308 = vld [vmem:[%s246] sm:$0xff]
      %310 = vst [vmem:[#allocation1] ss:$2 sm:$0xff] %v308
      %v311 = vld.sshfl [vmem:[#allocation1] sm:$0xff pattern:$0x75316420]
      %v312 = vld.sshfl [vmem:[#allocation1 + $0x8] sm:$0xff pattern:$0x75316420]
      %315 = vmatpush.msra.mxu0 %v271
      %316 = vmatpush.msra.mxu0 %v270
      %317 = vmatpush.msra.mxu0 %v269
      %318 = vmatpush.msra.mxu0 %v268
      %319 = vmatpush.msra.mxu0 %v267
      %320 = vmatpush.msra.mxu0 %v266
      %321 = vmatpush.msra.mxu0 %v265
      %322 = vmatpush.msra.mxu0 %v264
      %323 = vmatpush.msra.mxu0 %v263
      %324 = vmatpush.msra.mxu0 %v262
      %325 = vmatpush.msra.mxu0 %v261
      %326 = vmatpush.msra.mxu0 %v260
      %327 = vmatpush.msra.mxu0 %v259
      %328 = vmatpush.msra.mxu0 %v258
      %329 = vmatpush.msra.mxu0 %v257
      %330 = vmatpush.msra.mxu0 %v256
      %331 = vmatmul.f32.gmra.mxu0 %v311
      %v332 = vpop.f32.mrf.mxu0
      %v333 = vadd.f32 0.0, %v332
      %334 = vdwg.mxu0
      %335 = vmatpush.msra.mxu0 %v287
      %336 = vmatpush.msra.mxu0 %v286
      %337 = vmatpush.msra.mxu0 %v285
      %338 = vmatpush.msra.mxu0 %v284
      %339 = vmatpush.msra.mxu0 %v283
      %340 = vmatpush.msra.mxu0 %v282
      %341 = vmatpush.msra.mxu0 %v281
      %342 = vmatpush.msra.mxu0 %v280
      %343 = vmatpush.msra.mxu0 %v279
      %344 = vmatpush.msra.mxu0 %v278
      %345 = vmatpush.msra.mxu0 %v277
      %346 = vmatpush.msra.mxu0 %v276
      %347 = vmatpush.msra.mxu0 %v275
      %348 = vmatpush.msra.mxu0 %v274
      %349 = vmatpush.msra.mxu0 %v273
      %350 = vmatpush.msra.mxu0 %v272
      %351 = vmatmul.f32.gmra.mxu0 %v312
      %v352 = vpop.f32.mrf.mxu0
      %v353 = vadd.f32 %v333, %v352
      %354 = vdwg.mxu0
      %v355 = vmul.f32 %v308, %v308
      %357 = vst [vmem:[#allocation1] ss:$2 sm:$0xff] %v355
      %v358 = vld.sshfl [vmem:[#allocation1] sm:$0xff pattern:$0x75316420]
      %v359 = vld.sshfl [vmem:[#allocation1 + $0x8] sm:$0xff pattern:$0x75316420]
      %362 = vmatpush.msra.mxu0 %v271
      %363 = vmatpush.msra.mxu0 %v270
      %364 = vmatpush.msra.mxu0 %v269
      %365 = vmatpush.msra.mxu0 %v268
      %366 = vmatpush.msra.mxu0 %v267
      %367 = vmatpush.msra.mxu0 %v266
      %368 = vmatpush.msra.mxu0 %v265
      %369 = vmatpush.msra.mxu0 %v264
      %370 = vmatpush.msra.mxu0 %v263
      %371 = vmatpush.msra.mxu0 %v262
      %372 = vmatpush.msra.mxu0 %v261
      %373 = vmatpush.msra.mxu0 %v260
      %374 = vmatpush.msra.mxu0 %v259
      %375 = vmatpush.msra.mxu0 %v258
      %376 = vmatpush.msra.mxu0 %v257
      %377 = vmatpush.msra.mxu0 %v256
      %378 = vmatmul.f32.gmra.mxu0 %v358
      %v379 = vpop.f32.mrf.mxu0
      %v380 = vadd.f32 0.0, %v379
      %381 = vdwg.mxu0
      %382 = vmatpush.msra.mxu0 %v287
      %383 = vmatpush.msra.mxu0 %v286
      %384 = vmatpush.msra.mxu0 %v285
      %385 = vmatpush.msra.mxu0 %v284
      %386 = vmatpush.msra.mxu0 %v283
      %387 = vmatpush.msra.mxu0 %v282
      %388 = vmatpush.msra.mxu0 %v281
      %389 = vmatpush.msra.mxu0 %v280
      %390 = vmatpush.msra.mxu0 %v279
      %391 = vmatpush.msra.mxu0 %v278
      %392 = vmatpush.msra.mxu0 %v277
      %393 = vmatpush.msra.mxu0 %v276
      %394 = vmatpush.msra.mxu0 %v275
      %395 = vmatpush.msra.mxu0 %v274
      %396 = vmatpush.msra.mxu0 %v273
      %397 = vmatpush.msra.mxu0 %v272
      %398 = vmatmul.f32.gmra.mxu0 %v359
      %v399 = vpop.f32.mrf.mxu0
      %v400 = vadd.f32 %v380, %v399
      %401 = vdwg.mxu0
      %v402 = vmul.f32 %v353, 0.00390625
      %v403 = vmul.f32 %v400, 0.00390625
      %v404 = vmul.f32 %v402, %v402
      %v405 = vsub.f32 %v403, %v404
      %v406 = vmax.f32 %v405, 0.0
      %v407 = vadd.f32 %v406, 1e-05
      %v408 = vrsqrt.pop %v407
      %v409 = vmul.f32 %v408, %v407
      %v410 = vmul.f32 %v409, %v408
      %v411 = vmul.f32 0.5, %v410
      %v412 = vsub.f32 1.5, %v411
      %v413 = vmul.f32 %v408, %v412
      %vm414 = vweird.f32 %v407
      %vm415 = vweird.f32 %v408
      %vm416 = vmor %vm414, %vm415
      %v417 = vsel %vm416, %v408, %v413
      %v418 = vmul.f32 %v288, %v417
      %v419 = vmul.f32 %v402, %v418
      %421 = vrot.lane.b32.xlu0 %v419, 1
      %v422 = vpop.permute.xlu0 %421
      %v424 = vsub.f32 %v288, %v422
      %426 = vset.pattern.permute.xlu0 0
      %427 = vperm.xlu0 %426, %v418
      %v428 = vpop.permute.xlu0 %427
      %v430 = vunpack.c.l.s4 839922192
      %v431 = vunpack.c.0.s8 %v430
      %v432 = vperm.slane %v428, %v431
      %v434 = vmul.f32 %v308, %v432
      %436 = vset.pattern.permute.xlu0 1
      %437 = vperm.xlu0 %436, %v424
      %v438 = vpop.permute.xlu0 %437
      %v440 = vunpack.c.l.s4 839922192
      %v441 = vunpack.c.0.s8 %v440
      %v442 = vperm.slane %v438, %v441
      %v444 = vadd.f32 %v434, %v442
      %v445 = vmax.f32 %v444, 0.0
      %447 = vst [vmem:[#allocation1] ss:$2 sm:$0xff] %v445
      %v448 = vld.sshfl [vmem:[#allocation1] sm:$0xff pattern:$0x75316420]
      %v449 = vld.sshfl [vmem:[#allocation1 + $0x8] sm:$0xff pattern:$0x75316420]
      %452 = vrot.lane.b32.xlu0 %v448, 17
      %v453 = vpop.permute.xlu0 %452
      %454 = vrot.lane.b32.xlu0 %v449, 17
      %v455 = vpop.permute.xlu0 %454
      %v456 = vlaneseq
      %v457 = vand.u32 %v456, 127
      %vm458 = vcmp.lt.s32.totalorder %v457, 17
      %v459 = vsel %vm458, %v453, %v455
      %v460 = vsel %vm458, %v455, %v453
      %v461 = vperm.slane %v252, 0
      %v462 = vperm.slane %v253, 0
      %v463 = vmul.f32 %v460, %v461
      %v464 = vmul.f32 %v459, %v462
      %465 = vst [vmem:[#allocation2] sm:$0xf] %v463
      %466 = vst [vmem:[#allocation2 + $0x8] sm:$0xf] %v464
      %467 = vst [vmem:[#allocation1] ss:$2 sm:$0xff] %v445
      %v468 = vld.sshfl [vmem:[#allocation1] sm:$0xff pattern:$0x75316420]
      %v469 = vld.sshfl [vmem:[#allocation1 + $0x8] sm:$0xff pattern:$0x75316420]
      %472 = vrot.lane.b32.xlu0 %v468, 16
      %v473 = vpop.permute.xlu0 %472
      %474 = vrot.lane.b32.xlu0 %v469, 16
      %v475 = vpop.permute.xlu0 %474
      %vm476 = vcmp.lt.s32.totalorder %v457, 16
      %v477 = vsel %vm476, %v473, %v475
      %v478 = vsel %vm476, %v475, %v473
      %v479 = vperm.slane %v252, 1
      %v480 = vperm.slane %v253, 1
      %v481 = vmul.f32 %v478, %v479
      %v482 = vmul.f32 %v477, %v480
      %v485 = vrot.slane %v481, 4
      %v486 = vrot.slane %v482, 4
      %489 = vst [vmem:[#allocation2] sm:$0xf0] %v485
      %490 = vst [vmem:[#allocation2 + $0x8] sm:$0xf0] %v486
      %491 = vst [vmem:[#allocation1] ss:$2 sm:$0xff] %v445
      %v492 = vld.sshfl [vmem:[#allocation1] sm:$0xff pattern:$0x75316420]
      %v493 = vld.sshfl [vmem:[#allocation1 + $0x8] sm:$0xff pattern:$0x75316420]
      %496 = vrot.lane.b32.xlu0 %v492, 15
      %v497 = vpop.permute.xlu0 %496
      %498 = vrot.lane.b32.xlu0 %v493, 15
      %v499 = vpop.permute.xlu0 %498
      %vm500 = vcmp.lt.s32.totalorder %v457, 15
      %v501 = vsel %vm500, %v497, %v499
      %v502 = vsel %vm500, %v499, %v497
      %v503 = vperm.slane %v252, 2
      %v504 = vperm.slane %v253, 2
      %v505 = vmul.f32 %v502, %v503
      %v506 = vmul.f32 %v501, %v504
      %507 = vst [vmem:[#allocation2 + $0x10] sm:$0xf] %v505
      %508 = vst [vmem:[#allocation2 + $0x18] sm:$0xf] %v506
      %509 = vst [vmem:[#allocation1] ss:$2 sm:$0xff] %v445
      %v510 = vld.sshfl [vmem:[#allocation1] sm:$0xff pattern:$0x75316420]
      %v511 = vld.sshfl [vmem:[#allocation1 + $0x8] sm:$0xff pattern:$0x75316420]
      %514 = vrot.lane.b32.xlu0 %v510, 1
      %v515 = vpop.permute.xlu0 %514
      %516 = vrot.lane.b32.xlu0 %v511, 1
      %v517 = vpop.permute.xlu0 %516
      %vm518 = vcmp.lt.s32.totalorder %v457, 1
      %v519 = vsel %vm518, %v515, %v517
      %v520 = vsel %vm518, %v517, %v515
      %v521 = vperm.slane %v252, 3
      %v522 = vperm.slane %v253, 3
      %v523 = vmul.f32 %v520, %v521
      %v524 = vmul.f32 %v519, %v522
      %v527 = vrot.slane %v523, 4
      %v528 = vrot.slane %v524, 4
      %531 = vst [vmem:[#allocation2 + $0x10] sm:$0xf0] %v527
      %532 = vst [vmem:[#allocation2 + $0x18] sm:$0xf0] %v528
      %v533 = vperm.slane %v252, 4
      %v534 = vperm.slane %v253, 4
      %v537 = vrot.slane %v534, 4
      %v538 = vsel %vm293, %v533, %v537
      %v540 = vmul.f32 %v445, %v538
      %542 = vst [vmem:[#allocation1] ss:$2 sm:$0xff] %v540
      %v543 = vld.sshfl [vmem:[#allocation1] sm:$0xff pattern:$0x75316420]
      %v544 = vld.sshfl [vmem:[#allocation1 + $0x8] sm:$0xff pattern:$0x75316420]
      %547 = vst [vmem:[#allocation2 + $0x20] sm:$0xf] %v543
      %548 = vst [vmem:[#allocation2 + $0x28] sm:$0xf] %v544
      %549 = vst [vmem:[#allocation1] ss:$2 sm:$0xff] %v445
      %v550 = vld.sshfl [vmem:[#allocation1] sm:$0xff pattern:$0x75316420]
      %v551 = vld.sshfl [vmem:[#allocation1 + $0x8] sm:$0xff pattern:$0x75316420]
      %554 = vrot.lane.b32.xlu0 %v550, 127
      %v555 = vpop.permute.xlu0 %554
      %556 = vrot.lane.b32.xlu0 %v551, 127
      %v557 = vpop.permute.xlu0 %556
      %vm558 = vcmp.lt.s32.totalorder %v457, 127
      %v559 = vsel %vm558, %v555, %v557
      %v560 = vsel %vm558, %v557, %v555
      %v561 = vperm.slane %v252, 5
      %v562 = vperm.slane %v253, 5
      %v563 = vmul.f32 %v559, %v561
      %v564 = vmul.f32 %v560, %v562
      %v567 = vrot.slane %v563, 4
      %v568 = vrot.slane %v564, 4
      %571 = vst [vmem:[#allocation2 + $0x20] sm:$0xf0] %v567
      %572 = vst [vmem:[#allocation2 + $0x28] sm:$0xf0] %v568
      %573 = vst [vmem:[#allocation1] ss:$2 sm:$0xff] %v445
      %v574 = vld.sshfl [vmem:[#allocation1] sm:$0xff pattern:$0x75316420]
      %v575 = vld.sshfl [vmem:[#allocation1 + $0x8] sm:$0xff pattern:$0x75316420]
      %578 = vrot.lane.b32.xlu0 %v574, 113
      %v579 = vpop.permute.xlu0 %578
      %580 = vrot.lane.b32.xlu0 %v575, 113
      %v581 = vpop.permute.xlu0 %580
      %vm582 = vcmp.lt.s32.totalorder %v457, 113
      %v583 = vsel %vm582, %v579, %v581
      %v584 = vsel %vm582, %v581, %v579
      %v585 = vperm.slane %v252, 6
      %v586 = vperm.slane %v253, 6
      %v587 = vmul.f32 %v583, %v585
      %v588 = vmul.f32 %v584, %v586
      %589 = vst [vmem:[#allocation2 + $0x30] sm:$0xf] %v587
      %590 = vst [vmem:[#allocation2 + $0x38] sm:$0xf] %v588
      %591 = vst [vmem:[#allocation1] ss:$2 sm:$0xff] %v445
      %v592 = vld.sshfl [vmem:[#allocation1] sm:$0xff pattern:$0x75316420]
      %v593 = vld.sshfl [vmem:[#allocation1 + $0x8] sm:$0xff pattern:$0x75316420]
      %596 = vrot.lane.b32.xlu0 %v592, 112
      %v597 = vpop.permute.xlu0 %596
      %598 = vrot.lane.b32.xlu0 %v593, 112
      %v599 = vpop.permute.xlu0 %598
      %vm600 = vcmp.lt.s32.totalorder %v457, 112
      %v601 = vsel %vm600, %v597, %v599
      %v602 = vsel %vm600, %v599, %v597
      %v603 = vperm.slane %v252, 7
      %v604 = vperm.slane %v253, 7
      %v605 = vmul.f32 %v601, %v603
      %v606 = vmul.f32 %v602, %v604
      %v609 = vrot.slane %v605, 4
      %v610 = vrot.slane %v606, 4
      %613 = vst [vmem:[#allocation2 + $0x30] sm:$0xf0] %v609
      %614 = vst [vmem:[#allocation2 + $0x38] sm:$0xf0] %v610
      %615 = vst [vmem:[#allocation1] ss:$2 sm:$0xff] %v445
      %v616 = vld.sshfl [vmem:[#allocation1] sm:$0xff pattern:$0x75316420]
      %v617 = vld.sshfl [vmem:[#allocation1 + $0x8] sm:$0xff pattern:$0x75316420]
      %620 = vrot.lane.b32.xlu0 %v616, 111
      %v621 = vpop.permute.xlu0 %620
      %622 = vrot.lane.b32.xlu0 %v617, 111
      %v623 = vpop.permute.xlu0 %622
      %vm624 = vcmp.lt.s32.totalorder %v457, 111
      %v625 = vsel %vm624, %v621, %v623
      %v626 = vsel %vm624, %v623, %v621
      %v627 = vperm.slane %v254, 0
      %v628 = vperm.slane %v255, 0
      %v629 = vmul.f32 %v625, %v627
      %v630 = vmul.f32 %v626, %v628
      %631 = vst [vmem:[#allocation2 + $0x40] sm:$0xf] %v629
      %632 = vst [vmem:[#allocation2 + $0x48] sm:$0xf] %v630
      %v633 = vld [vmem:[%s4] sm:$0xf]
      %v634 = vld [vmem:[#allocation2] sm:$0xff]
      %v635 = vld [vmem:[#allocation2 + $0x8] sm:$0xff]
      %v636 = vld [vmem:[#allocation2 + $0x10] sm:$0xff]
      %v637 = vld [vmem:[#allocation2 + $0x18] sm:$0xff]
      %v638 = vld [vmem:[#allocation2 + $0x20] sm:$0xff]
      %v639 = vld [vmem:[#allocation2 + $0x28] sm:$0xff]
      %v640 = vld [vmem:[#allocation2 + $0x30] sm:$0xff]
      %v641 = vld [vmem:[#allocation2 + $0x38] sm:$0xff]
      %v642 = vld [vmem:[#allocation2 + $0x40] sm:$0xff]
      %v643 = vld [vmem:[#allocation2 + $0x48] sm:$0xff]
      %v644 = vld [vmem:[#allocation2 + $0x50] sm:$0x3f]
      %v645 = vld [vmem:[#allocation2 + $0x58] sm:$0x3f]
      %vm646 = vcmask 375808
      %v648 = vsel %vm646, %v633, 0
      %vm650 = vcmask 1045504
      %v652 = vsel %vm650, %v644, 0
      %v655 = vsel %vm650, %v645, 0
      %657 = vmatpush.msra.mxu0 0.0
      %658 = vmatpush.msra.mxu0 0.0
      %659 = vmatpush.msra.mxu0 0.0
      %660 = vmatpush.msra.mxu0 0.0
      %661 = vmatpush.msra.mxu0 0.0
      %662 = vmatpush.msra.mxu0 0.0
      %663 = vmatpush.msra.mxu0 0.0
      %664 = vmatpush.msra.mxu0 0.0
      %665 = vmatpush.msra.mxu0 0.0
      %666 = vmatpush.msra.mxu0 0.0
      %667 = vmatpush.msra.mxu0 %v652
      %668 = vmatpush.msra.mxu0 %v642
      %669 = vmatpush.msra.mxu0 %v640
      %670 = vmatpush.msra.mxu0 %v638
      %671 = vmatpush.msra.mxu0 %v636
      %672 = vmatpush.msra.mxu0 %v634
      %673 = vmatmul.f32.gmra.mxu0 %v648
      %v674 = vpop.f32.mrf.mxu0
      %v675 = vadd.f32 0.0, %v674
      %676 = vdwg.mxu0
      %677 = vmatpush.msra.mxu0 0.0
      %678 = vmatpush.msra.mxu0 0.0
      %679 = vmatpush.msra.mxu0 0.0
      %680 = vmatpush.msra.mxu0 0.0
      %681 = vmatpush.msra.mxu0 0.0
      %682 = vmatpush.msra.mxu0 0.0
      %683 = vmatpush.msra.mxu0 0.0
      %684 = vmatpush.msra.mxu0 0.0
      %685 = vmatpush.msra.mxu0 0.0
      %686 = vmatpush.msra.mxu0 0.0
      %687 = vmatpush.msra.mxu0 %v655
      %688 = vmatpush.msra.mxu0 %v643
      %689 = vmatpush.msra.mxu0 %v641
      %690 = vmatpush.msra.mxu0 %v639
      %691 = vmatpush.msra.mxu0 %v637
      %692 = vmatpush.msra.mxu0 %v635
      %693 = vmatmul.f32.gmra.mxu0 %v648
      %v694 = vpop.f32.mrf.mxu0
      %v695 = vadd.f32 0.0, %v694
      %696 = vdwg.mxu0
      %697 = vmatpush.msra.mxu0 %v271
      %698 = vmatpush.msra.mxu0 %v270
      %699 = vmatpush.msra.mxu0 %v269
      %700 = vmatpush.msra.mxu0 %v268
      %701 = vmatpush.msra.mxu0 %v267
      %702 = vmatpush.msra.mxu0 %v266
      %703 = vmatpush.msra.mxu0 %v265
      %704 = vmatpush.msra.mxu0 %v264
      %705 = vmatpush.msra.mxu0 %v263
      %706 = vmatpush.msra.mxu0 %v262
      %707 = vmatpush.msra.mxu0 %v261
      %708 = vmatpush.msra.mxu0 %v260
      %709 = vmatpush.msra.mxu0 %v259
      %710 = vmatpush.msra.mxu0 %v258
      %711 = vmatpush.msra.mxu0 %v257
      %712 = vmatpush.msra.mxu0 %v256
      %713 = vmatmul.f32.gmra.mxu0 %v675
      %v714 = vpop.f32.mrf.mxu0
      %v715 = vadd.f32 0.0, %v714
      %716 = vdwg.mxu0
      %717 = vmatpush.msra.mxu0 %v287
      %718 = vmatpush.msra.mxu0 %v286
      %719 = vmatpush.msra.mxu0 %v285
      %720 = vmatpush.msra.mxu0 %v284
      %721 = vmatpush.msra.mxu0 %v283
      %722 = vmatpush.msra.mxu0 %v282
      %723 = vmatpush.msra.mxu0 %v281
      %724 = vmatpush.msra.mxu0 %v280
      %725 = vmatpush.msra.mxu0 %v279
      %726 = vmatpush.msra.mxu0 %v278
      %727 = vmatpush.msra.mxu0 %v277
      %728 = vmatpush.msra.mxu0 %v276
      %729 = vmatpush.msra.mxu0 %v275
      %730 = vmatpush.msra.mxu0 %v274
      %731 = vmatpush.msra.mxu0 %v273
      %732 = vmatpush.msra.mxu0 %v272
      %733 = vmatmul.f32.gmra.mxu0 %v695
      %v734 = vpop.f32.mrf.mxu0
      %v735 = vadd.f32 %v715, %v734
      %736 = vdwg.mxu0
      %v737 = vmul.f32 %v675, %v675
      %v738 = vmul.f32 %v695, %v695
      %739 = vmatpush.msra.mxu0 %v271
      %740 = vmatpush.msra.mxu0 %v270
      %741 = vmatpush.msra.mxu0 %v269
      %742 = vmatpush.msra.mxu0 %v268
      %743 = vmatpush.msra.mxu0 %v267
      %744 = vmatpush.msra.mxu0 %v266
      %745 = vmatpush.msra.mxu0 %v265
      %746 = vmatpush.msra.mxu0 %v264
      %747 = vmatpush.msra.mxu0 %v263
      %748 = vmatpush.msra.mxu0 %v262
      %749 = vmatpush.msra.mxu0 %v261
      %750 = vmatpush.msra.mxu0 %v260
      %751 = vmatpush.msra.mxu0 %v259
      %752 = vmatpush.msra.mxu0 %v258
      %753 = vmatpush.msra.mxu0 %v257
      %754 = vmatpush.msra.mxu0 %v256
      %755 = vmatmul.f32.gmra.mxu0 %v737
      %v756 = vpop.f32.mrf.mxu0
      %v757 = vadd.f32 0.0, %v756
      %758 = vdwg.mxu0
      %759 = vmatpush.msra.mxu0 %v287
      %760 = vmatpush.msra.mxu0 %v286
      %761 = vmatpush.msra.mxu0 %v285
      %762 = vmatpush.msra.mxu0 %v284
      %763 = vmatpush.msra.mxu0 %v283
      %764 = vmatpush.msra.mxu0 %v282
      %765 = vmatpush.msra.mxu0 %v281
      %766 = vmatpush.msra.mxu0 %v280
      %767 = vmatpush.msra.mxu0 %v279
      %768 = vmatpush.msra.mxu0 %v278
      %769 = vmatpush.msra.mxu0 %v277
      %770 = vmatpush.msra.mxu0 %v276
      %771 = vmatpush.msra.mxu0 %v275
      %772 = vmatpush.msra.mxu0 %v274
      %773 = vmatpush.msra.mxu0 %v273
      %774 = vmatpush.msra.mxu0 %v272
      %775 = vmatmul.f32.gmra.mxu0 %v738
      %v776 = vpop.f32.mrf.mxu0
      %v777 = vadd.f32 %v757, %v776
      %778 = vdwg.mxu0
      %v779 = vmul.f32 %v735, 0.00390625
      %v780 = vmul.f32 %v777, 0.00390625
      %v781 = vmul.f32 %v779, %v779
      %v782 = vsub.f32 %v780, %v781
      %v783 = vmax.f32 %v782, 0.0
      %v784 = vadd.f32 %v783, 1e-05
      %v785 = vrsqrt.pop %v784
      %v786 = vmul.f32 %v785, %v784
      %v787 = vmul.f32 %v786, %v785
      %v788 = vmul.f32 0.5, %v787
      %v789 = vsub.f32 1.5, %v788
      %v790 = vmul.f32 %v785, %v789
      %vm791 = vweird.f32 %v784
      %vm792 = vweird.f32 %v785
      %vm793 = vmor %vm791, %vm792
      %v794 = vsel %vm793, %v785, %v790
      %796 = vrot.lane.b32.xlu0 %v794, 2
      %v797 = vpop.permute.xlu0 %796
      %v799 = vmul.f32 %v288, %v797
      %801 = vrot.lane.b32.xlu0 %v799, 126
      %v802 = vpop.permute.xlu0 %801
      %v804 = vmul.f32 %v779, %v802
      %806 = vrot.lane.b32.xlu0 %v804, 3
      %v807 = vpop.permute.xlu0 %806
      %v809 = vsub.f32 %v288, %v807
      %810 = vset.pattern.permute.xlu0 2
      %811 = vperm.xlu0 %810, %v799
      %v812 = vpop.permute.xlu0 %811
      %v814 = vmul.f32 %v675, %v812
      %v815 = vmul.f32 %v695, %v812
      %817 = vset.pattern.permute.xlu0 3
      %818 = vperm.xlu0 %817, %v809
      %v819 = vpop.permute.xlu0 %818
      %v821 = vadd.f32 %v814, %v819
      %v822 = vadd.f32 %v815, %v819
      %v823 = vmax.f32 %v821, 0.0
      %v824 = vmax.f32 %v822, 0.0
      %825 = vrot.lane.b32.xlu0 %v823, 17
      %v826 = vpop.permute.xlu0 %825
      %827 = vrot.lane.b32.xlu0 %v824, 17
      %v828 = vpop.permute.xlu0 %827
      %v829 = vsel %vm458, %v826, %v828
      %v830 = vsel %vm458, %v828, %v826
      %v831 = vmul.f32 %v830, %v461
      %v832 = vmul.f32 %v829, %v462
      %833 = vst [vmem:[#allocation2] sm:$0xf] %v831
      %834 = vst [vmem:[#allocation2 + $0x8] sm:$0xf] %v832
      %835 = vrot.lane.b32.xlu0 %v823, 16
      %v836 = vpop.permute.xlu0 %835
      %837 = vrot.lane.b32.xlu0 %v824, 16
      %v838 = vpop.permute.xlu0 %837
      %v839 = vsel %vm476, %v836, %v838
      %v840 = vsel %vm476, %v838, %v836
      %v841 = vmul.f32 %v840, %v479
      %v842 = vmul.f32 %v839, %v480
      %v845 = vrot.slane %v841, 4
      %v846 = vrot.slane %v842, 4
      %849 = vst [vmem:[#allocation2] sm:$0xf0] %v845
      %850 = vst [vmem:[#allocation2 + $0x8] sm:$0xf0] %v846
      %851 = vrot.lane.b32.xlu0 %v823, 15
      %v852 = vpop.permute.xlu0 %851
      %853 = vrot.lane.b32.xlu0 %v824, 15
      %v854 = vpop.permute.xlu0 %853
      %v855 = vsel %vm500, %v852, %v854
      %v856 = vsel %vm500, %v854, %v852
      %v857 = vmul.f32 %v856, %v503
      %v858 = vmul.f32 %v855, %v504
      %859 = vst [vmem:[#allocation2 + $0x10] sm:$0xf] %v857
      %860 = vst [vmem:[#allocation2 + $0x18] sm:$0xf] %v858
      %861 = vrot.lane.b32.xlu0 %v823, 1
      %v862 = vpop.permute.xlu0 %861
      %863 = vrot.lane.b32.xlu0 %v824, 1
      %v864 = vpop.permute.xlu0 %863
      %v865 = vsel %vm518, %v862, %v864
      %v866 = vsel %vm518, %v864, %v862
      %v867 = vmul.f32 %v866, %v521
      %v868 = vmul.f32 %v865, %v522
      %v871 = vrot.slane %v867, 4
      %v872 = vrot.slane %v868, 4
      %875 = vst [vmem:[#allocation2 + $0x10] sm:$0xf0] %v871
      %876 = vst [vmem:[#allocation2 + $0x18] sm:$0xf0] %v872
      %v877 = vmul.f32 %v823, %v533
      %v878 = vmul.f32 %v824, %v534
      %879 = vst [vmem:[#allocation2 + $0x20] sm:$0xf] %v877
      %880 = vst [vmem:[#allocation2 + $0x28] sm:$0xf] %v878
      %881 = vrot.lane.b32.xlu0 %v823, 127
      %v882 = vpop.permute.xlu0 %881
      %883 = vrot.lane.b32.xlu0 %v824, 127
      %v884 = vpop.permute.xlu0 %883
      %v885 = vsel %vm558, %v882, %v884
      %v886 = vsel %vm558, %v884, %v882
      %v887 = vmul.f32 %v885, %v561
      %v888 = vmul.f32 %v886, %v562
      %v891 = vrot.slane %v887, 4
      %v892 = vrot.slane %v888, 4
      %895 = vst [vmem:[#allocation2 + $0x20] sm:$0xf0] %v891
      %896 = vst [vmem:[#allocation2 + $0x28] sm:$0xf0] %v892
      %897 = vrot.lane.b32.xlu0 %v823, 113
      %v898 = vpop.permute.xlu0 %897
      %899 = vrot.lane.b32.xlu0 %v824, 113
      %v900 = vpop.permute.xlu0 %899
      %v901 = vsel %vm582, %v898, %v900
      %v902 = vsel %vm582, %v900, %v898
      %v903 = vmul.f32 %v901, %v585
      %v904 = vmul.f32 %v902, %v586
      %905 = vst [vmem:[#allocation2 + $0x30] sm:$0xf] %v903
      %906 = vst [vmem:[#allocation2 + $0x38] sm:$0xf] %v904
      %907 = vrot.lane.b32.xlu0 %v823, 112
      %v908 = vpop.permute.xlu0 %907
      %909 = vrot.lane.b32.xlu0 %v824, 112
      %v910 = vpop.permute.xlu0 %909
      %v911 = vsel %vm600, %v908, %v910
      %v912 = vsel %vm600, %v910, %v908
      %v913 = vmul.f32 %v911, %v603
      %v914 = vmul.f32 %v912, %v604
      %v917 = vrot.slane %v913, 4
      %v918 = vrot.slane %v914, 4
      %921 = vst [vmem:[#allocation2 + $0x30] sm:$0xf0] %v917
      %922 = vst [vmem:[#allocation2 + $0x38] sm:$0xf0] %v918
      %923 = vrot.lane.b32.xlu0 %v823, 111
      %v924 = vpop.permute.xlu0 %923
      %925 = vrot.lane.b32.xlu0 %v824, 111
      %v926 = vpop.permute.xlu0 %925
      %v927 = vsel %vm624, %v924, %v926
      %v928 = vsel %vm624, %v926, %v924
      %v929 = vmul.f32 %v927, %v627
      %v930 = vmul.f32 %v928, %v628
      %931 = vst [vmem:[#allocation2 + $0x40] sm:$0xf] %v929
      %932 = vst [vmem:[#allocation2 + $0x48] sm:$0xf] %v930
      %v933 = vld [vmem:[%s5] sm:$0xf]
      %v934 = vld [vmem:[#allocation2] sm:$0xff]
      %v935 = vld [vmem:[#allocation2 + $0x8] sm:$0xff]
      %v936 = vld [vmem:[#allocation2 + $0x10] sm:$0xff]
      %v937 = vld [vmem:[#allocation2 + $0x18] sm:$0xff]
      %v938 = vld [vmem:[#allocation2 + $0x20] sm:$0xff]
      %v939 = vld [vmem:[#allocation2 + $0x28] sm:$0xff]
      %v940 = vld [vmem:[#allocation2 + $0x30] sm:$0xff]
      %v941 = vld [vmem:[#allocation2 + $0x38] sm:$0xff]
      %v942 = vld [vmem:[#allocation2 + $0x40] sm:$0xff]
      %v943 = vld [vmem:[#allocation2 + $0x48] sm:$0xff]
      %v944 = vld [vmem:[#allocation2 + $0x50] sm:$0x3f]
      %v945 = vld [vmem:[#allocation2 + $0x58] sm:$0x3f]
      %v947 = vsel %vm646, %v933, 0
      %v950 = vsel %vm650, %v944, 0
      %v953 = vsel %vm650, %v945, 0
      %955 = vmatpush.msra.mxu0 0.0
      %956 = vmatpush.msra.mxu0 0.0
      %957 = vmatpush.msra.mxu0 0.0
      %958 = vmatpush.msra.mxu0 0.0
      %959 = vmatpush.msra.mxu0 0.0
      %960 = vmatpush.msra.mxu0 0.0
      %961 = vmatpush.msra.mxu0 0.0
      %962 = vmatpush.msra.mxu0 0.0
      %963 = vmatpush.msra.mxu0 0.0
      %964 = vmatpush.msra.mxu0 0.0
      %965 = vmatpush.msra.mxu0 %v950
      %966 = vmatpush.msra.mxu0 %v942
      %967 = vmatpush.msra.mxu0 %v940
      %968 = vmatpush.msra.mxu0 %v938
      %969 = vmatpush.msra.mxu0 %v936
      %970 = vmatpush.msra.mxu0 %v934
      %971 = vmatmul.f32.gmra.mxu0 %v947
      %v972 = vpop.f32.mrf.mxu0
      %v973 = vadd.f32 0.0, %v972
      %974 = vdwg.mxu0
      %975 = vmatpush.msra.mxu0 0.0
      %976 = vmatpush.msra.mxu0 0.0
      %977 = vmatpush.msra.mxu0 0.0
      %978 = vmatpush.msra.mxu0 0.0
      %979 = vmatpush.msra.mxu0 0.0
      %980 = vmatpush.msra.mxu0 0.0
      %981 = vmatpush.msra.mxu0 0.0
      %982 = vmatpush.msra.mxu0 0.0
      %983 = vmatpush.msra.mxu0 0.0
      %984 = vmatpush.msra.mxu0 0.0
      %985 = vmatpush.msra.mxu0 %v953
      %986 = vmatpush.msra.mxu0 %v943
      %987 = vmatpush.msra.mxu0 %v941
      %988 = vmatpush.msra.mxu0 %v939
      %989 = vmatpush.msra.mxu0 %v937
      %990 = vmatpush.msra.mxu0 %v935
      %991 = vmatmul.f32.gmra.mxu0 %v947
      %v992 = vpop.f32.mrf.mxu0
      %v993 = vadd.f32 0.0, %v992
      %994 = vdwg.mxu0
      %995 = vmatpush.msra.mxu0 %v271
      %996 = vmatpush.msra.mxu0 %v270
      %997 = vmatpush.msra.mxu0 %v269
      %998 = vmatpush.msra.mxu0 %v268
      %999 = vmatpush.msra.mxu0 %v267
      %1000 = vmatpush.msra.mxu0 %v266
      %1001 = vmatpush.msra.mxu0 %v265
      %1002 = vmatpush.msra.mxu0 %v264
      %1003 = vmatpush.msra.mxu0 %v263
      %1004 = vmatpush.msra.mxu0 %v262
      %1005 = vmatpush.msra.mxu0 %v261
      %1006 = vmatpush.msra.mxu0 %v260
      %1007 = vmatpush.msra.mxu0 %v259
      %1008 = vmatpush.msra.mxu0 %v258
      %1009 = vmatpush.msra.mxu0 %v257
      %1010 = vmatpush.msra.mxu0 %v256
      %1011 = vmatmul.f32.gmra.mxu0 %v973
      %v1012 = vpop.f32.mrf.mxu0
      %v1013 = vadd.f32 0.0, %v1012
      %1014 = vdwg.mxu0
      %1015 = vmatpush.msra.mxu0 %v287
      %1016 = vmatpush.msra.mxu0 %v286
      %1017 = vmatpush.msra.mxu0 %v285
      %1018 = vmatpush.msra.mxu0 %v284
      %1019 = vmatpush.msra.mxu0 %v283
      %1020 = vmatpush.msra.mxu0 %v282
      %1021 = vmatpush.msra.mxu0 %v281
      %1022 = vmatpush.msra.mxu0 %v280
      %1023 = vmatpush.msra.mxu0 %v279
      %1024 = vmatpush.msra.mxu0 %v278
      %1025 = vmatpush.msra.mxu0 %v277
      %1026 = vmatpush.msra.mxu0 %v276
      %1027 = vmatpush.msra.mxu0 %v275
      %1028 = vmatpush.msra.mxu0 %v274
      %1029 = vmatpush.msra.mxu0 %v273
      %1030 = vmatpush.msra.mxu0 %v272
      %1031 = vmatmul.f32.gmra.mxu0 %v993
      %v1032 = vpop.f32.mrf.mxu0
      %v1033 = vadd.f32 %v1013, %v1032
      %1034 = vdwg.mxu0
      %v1035 = vmul.f32 %v973, %v973
      %v1036 = vmul.f32 %v993, %v993
      %1037 = vmatpush.msra.mxu0 %v271
      %1038 = vmatpush.msra.mxu0 %v270
      %1039 = vmatpush.msra.mxu0 %v269
      %1040 = vmatpush.msra.mxu0 %v268
      %1041 = vmatpush.msra.mxu0 %v267
      %1042 = vmatpush.msra.mxu0 %v266
      %1043 = vmatpush.msra.mxu0 %v265
      %1044 = vmatpush.msra.mxu0 %v264
      %1045 = vmatpush.msra.mxu0 %v263
      %1046 = vmatpush.msra.mxu0 %v262
      %1047 = vmatpush.msra.mxu0 %v261
      %1048 = vmatpush.msra.mxu0 %v260
      %1049 = vmatpush.msra.mxu0 %v259
      %1050 = vmatpush.msra.mxu0 %v258
      %1051 = vmatpush.msra.mxu0 %v257
      %1052 = vmatpush.msra.mxu0 %v256
      %1053 = vmatmul.f32.gmra.mxu0 %v1035
      %v1054 = vpop.f32.mrf.mxu0
      %v1055 = vadd.f32 0.0, %v1054
      %1056 = vdwg.mxu0
      %1057 = vmatpush.msra.mxu0 %v287
      %1058 = vmatpush.msra.mxu0 %v286
      %1059 = vmatpush.msra.mxu0 %v285
      %1060 = vmatpush.msra.mxu0 %v284
      %1061 = vmatpush.msra.mxu0 %v283
      %1062 = vmatpush.msra.mxu0 %v282
      %1063 = vmatpush.msra.mxu0 %v281
      %1064 = vmatpush.msra.mxu0 %v280
      %1065 = vmatpush.msra.mxu0 %v279
      %1066 = vmatpush.msra.mxu0 %v278
      %1067 = vmatpush.msra.mxu0 %v277
      %1068 = vmatpush.msra.mxu0 %v276
      %1069 = vmatpush.msra.mxu0 %v275
      %1070 = vmatpush.msra.mxu0 %v274
      %1071 = vmatpush.msra.mxu0 %v273
      %1072 = vmatpush.msra.mxu0 %v272
      %1073 = vmatmul.f32.gmra.mxu0 %v1036
      %v1074 = vpop.f32.mrf.mxu0
      %v1075 = vadd.f32 %v1055, %v1074
      %1076 = vdwg.mxu0
      %v1077 = vmul.f32 %v1033, 0.00390625
      %v1078 = vmul.f32 %v1075, 0.00390625
      %v1079 = vmul.f32 %v1077, %v1077
      %v1080 = vsub.f32 %v1078, %v1079
      %v1081 = vmax.f32 %v1080, 0.0
      %v1082 = vadd.f32 %v1081, 1e-05
      %v1083 = vrsqrt.pop %v1082
      %v1084 = vmul.f32 %v1083, %v1082
      %v1085 = vmul.f32 %v1084, %v1083
      %v1086 = vmul.f32 0.5, %v1085
      %v1087 = vsub.f32 1.5, %v1086
      %v1088 = vmul.f32 %v1083, %v1087
      %vm1089 = vweird.f32 %v1082
      %vm1090 = vweird.f32 %v1083
      %vm1091 = vmor %vm1089, %vm1090
      %v1092 = vsel %vm1091, %v1083, %v1088
      %1094 = vrot.lane.b32.xlu0 %v1092, 4
      %v1095 = vpop.permute.xlu0 %1094
      %v1097 = vmul.f32 %v288, %v1095
      %1099 = vrot.lane.b32.xlu0 %v1097, 124
      %v1100 = vpop.permute.xlu0 %1099
      %v1102 = vmul.f32 %v1077, %v1100
      %1104 = vrot.lane.b32.xlu0 %v1102, 5
      %v1105 = vpop.permute.xlu0 %1104
      %v1107 = vsub.f32 %v288, %v1105
      %1108 = vset.pattern.permute.xlu0 4
      %1109 = vperm.xlu0 %1108, %v1097
      %v1110 = vpop.permute.xlu0 %1109
      %v1112 = vmul.f32 %v973, %v1110
      %v1113 = vmul.f32 %v993, %v1110
      %1115 = vset.pattern.permute.xlu0 5
      %1116 = vperm.xlu0 %1115, %v1107
      %v1117 = vpop.permute.xlu0 %1116
      %v1119 = vadd.f32 %v1112, %v1117
      %v1120 = vadd.f32 %v1113, %v1117
      %v1123 = vrot.slane %v1120, 4
      %v1124 = vsel %vm293, %v1119, %v1123
      %1126 = vst [vmem:[%s251] sm:$0xff] %v1124
      %p1127 = scmp.lt.s32.totalorder %s17, 1
      %s1128 = scalar_select %p1127, %s17, 1
      %s1129 = smul.addr %s1128, 2
      %s1130 = smul.addr %s1129, 4
      %s1131 = scalar_lea.vmem %s6, %s1130
      // Predicated region
      $region45: #{odefunc_forward.1} parent=43 // pred_check
        %p1132 = pneg %p166
      $region46: #{odefunc_forward.1} parent=43 // pred_check_branch
        %1134 = sbr.rel (%p1132) target = $region48
      $region47: #{odefunc_forward.1} parent=43 // pred_region
        _
      $region48: #{odefunc_forward.1} parent=43 // pred_fallthru
        _
    $region44: #{odefunc_forward.1} parent=5 // pred_fallthru
      _
    %p1135 = scmp.le.s32.totalorder 2, %s12
    // Predicated region
    $region49: #{odefunc_forward.1} parent=5 // pred_check
      %p1136 = pneg %p1135
    $region50: #{odefunc_forward.1} parent=5 // pred_check_branch
      %1138 = sbr.rel (%p1136) target = $region52
    $region51: #{odefunc_forward.1} parent=5 // pred_region
      %s1139 = ssub.s32 %s12, 2
      // Predicated region
      $region53: #{odefunc_forward.1} parent=51 // pred_check
        %p1140 = pneg %p172
      $region54: #{odefunc_forward.1} parent=51 // pred_check_branch
        %1142 = sbr.rel (%p1140) target = $region56
      $region55: #{odefunc_forward.1} parent=51 // pred_region
        %p1143 = scmp.lt.s32.totalorder %s18, 1
        %s1144 = scalar_select %p1143, %s18, 1
        %s1145 = smul.addr %s1144, 2
        %s1146 = smul.addr %s1145, 4
        %s1147 = scalar_lea.vmem %s6, %s1146
      $region56: #{odefunc_forward.1} parent=51 // pred_fallthru
        _
    $region52: #{odefunc_forward.1} parent=5 // pred_fallthru
      _
  $region6: #{odefunc_forward.1} parent=0 // loop_footer
    %s16 = sadd.s32 1, %s12
  $region7: #{odefunc_forward.1} parent=0 // loop_footer_branch
    %11 = sbr.rel target = $region3
  $region8: #{odefunc_forward.1} parent=0 // loop_exit
    _

</llo_original>
